<compile_context>
chip_gen: v7x
topology: tpu7x:2x2x1
jax: 0.10.0
libtpu: 0.0.40
codegen_flags: <defaults>
</compile_context>

<pallas_src>
import functools
import math

import jax
import jax.numpy as jnp
from jax import lax
from jax.experimental import pallas as pl
from jax.experimental.pallas import tpu as pltpu

DIM_SCALE = 2
LN_EPS = 1e-5


def _expand_norm_kernel(x_ref, w_ref, sg_ref, gb_ref, beta_ref, o_ref, *,
                        tile_rows, w_pack, out_w):
    # x_ref:    (tile_rows * w_pack, IN_W)     packed pixels (Kp pixels / row)
    # w_ref:    (IN_W, 2*OUT_W)                both-parity, group-centered weight
    # sg_ref:   (2*OUT_W, G)                   group mean-of-squares reduce matrix
    # gb_ref:   (G, 2*OUT_W)                   broadcast-back matrix (gamma folded)
    # beta_ref: (1, 2*OUT_W)                   tiled LayerNorm bias
    # o_ref:    (tile_rows, 2, w_pack, OUT_W)  output slab (row, parity, wt, lanes)
    x = x_ref[...]

    # Both output-row parities in one MXU matmul.  Group means are
    # pre-subtracted via the weight, so `yc` is already mean-centered per
    # LayerNorm group.  Accumulation in f32.
    yc = jnp.dot(x, w_ref[...], preferred_element_type=jnp.float32)

    # Per-group E[yc^2] via a small MXU matmul (no cross-lane XLU reductions).
    msq = jnp.dot(yc * yc, sg_ref[...], preferred_element_type=jnp.float32)

    # rsqrt per group (EUP), broadcast back across the group's lanes with the
    # LayerNorm weight folded into the broadcast matrix (MXU).
    scale = jnp.dot(lax.rsqrt(msq + LN_EPS), gb_ref[...],
                    preferred_element_type=jnp.float32)

    out = yc * scale + beta_ref[...]                      # f32 epilogue (v5e VPU)

    for q in range(DIM_SCALE):
        # Parity q occupies lane slice [q*OUT_W : (q+1)*OUT_W] (a 128-multiple
        # boundary when kp*C % 128 == 0).
        outq = out[:, q * out_w:(q + 1) * out_w]
        if w_pack % 8 == 0:
            # Single dense store: 8-aligned row split, cast only at the store.
            o_ref[:, q] = outq.reshape(tile_rows, w_pack, out_w).astype(o_ref.dtype)
        else:
            # Fallback for awkward widths (W/kp not 8-aligned): per-row slabs.
            for r in range(tile_rows):
                o_ref[r, q] = outq[r * w_pack:(r + 1) * w_pack, :].astype(o_ref.dtype)


def _choose_pack(C, W):
    """Pixels packed per kernel row (kp must divide W).

    Priorities (tuple-max over divisors of W):
      1. stored lane width kp*C is a multiple of 128  -> unmasked vst + dense
         input loads (stores are ~2/3 of HBM traffic, biggest lever),
      2. W // kp is a multiple of 8                   -> free in-kernel row
         split and 8-aligned sublanes,
      3. otherwise the smallest kp.
    The resident fused weight (kp*C x 2*kp*C, f32) is capped at ~8 MiB.
    """
    p = DIM_SCALE
    divisors = [k for k in range(1, W + 1) if W % k == 0]
    bounded = [k for k in divisors if 4 * p * (k * C) ** 2 <= (8 << 20)] or [1]

    def score(k):
        return ((k * C) % 128 == 0, (W // k) % 8 == 0, -k)

    return max(bounded, key=score)


def patch_expand_2d(x, w_expand, ln_gamma, ln_beta, *, tile_rows=None):
    """PatchExpand2D forward (fused expand + grouped LayerNorm + pixel shuffle).

    x:        (B, H, W, C)   with C == module's self.dim (f32 or bf16)
    w_expand: (2C, C)        nn.Linear(dim, 2*dim, bias=False).weight
    ln_gamma: (C // 2,)      nn.LayerNorm(dim // 2).weight
    ln_beta:  (C // 2,)      nn.LayerNorm(dim // 2).bias
    returns:  (B, 2H, 2W, C // 2) in x.dtype
    """
    B, H, W, C = x.shape
    p = DIM_SCALE
    assert C % p == 0, "channel count must be even"
    c_out = C // p
    f32 = jnp.float32

    kp = _choose_pack(C, W)        # pixels per packed kernel row
    wp = W // kp                   # packed columns per image row
    in_w = kp * C                  # kernel input width  (lanes)
    out_w = kp * C                 # per-parity stored width == kp * p * c_out
    ow_full = p * out_w            # both parities fused along the lane axis
    G = p * p * kp                 # LayerNorm groups per packed row (both parities)
    R = B * H                      # image rows

    # ---- fold the per-group mean subtraction into the expand weight --------
    wt = jnp.asarray(w_expand, f32).T                       # (C, 2C): y = x @ wt
    wt_g = wt.reshape(C, p * p, c_out)
    wc = (wt_g - jnp.mean(wt_g, axis=-1, keepdims=True)).reshape(C, p, p * c_out)
    blk = jnp.transpose(wc, (1, 0, 2))                      # (p1, C, p2*c_out)

    # Per-parity block-diagonal weights, fused along the output-lane axis.
    w_blk = jnp.zeros((p, in_w, out_w), f32)
    for j in range(kp):
        w_blk = w_blk.at[:, j * C:(j + 1) * C,
                         j * p * c_out:(j + 1) * p * c_out].set(blk)
    w_full = jnp.concatenate([w_blk[q] for q in range(p)], axis=1).astype(x.dtype)

    # ---- group reduce / gamma-broadcast matrices and tiled bias ------------
    lane = jnp.arange(ow_full)
    grp = lane // c_out                                     # group id per lane
    gid = jnp.arange(G)
    sg = (grp[:, None] == gid[None, :]).astype(f32) / float(c_out)   # (ow_full, G)
    gamma_t = jnp.tile(jnp.asarray(ln_gamma, f32), G)                 # (ow_full,)
    gb = (gid[:, None] == grp[None, :]).astype(f32) * gamma_t[None, :]  # (G, ow_full)
    beta_t = jnp.tile(jnp.asarray(ln_beta, f32), G).reshape(1, ow_full)

    # ---- pack the input (pure row-major reshape — free) --------------------
    x_pack = x.reshape(R * wp, in_w)

    # ---- tiling heuristic ---------------------------------------------------
    itemsize = jnp.dtype(x.dtype).itemsize
    if tile_rows is None:
        per_row_bytes = 3 * W * C * itemsize        # 1x read + 2x write per image row
        tile_rows = max(1, (4 << 20) // per_row_bytes)   # ~4 MiB fresh data / step
        if R > 1:
            tile_rows = min(tile_rows, pl.cdiv(R, 2))    # >=2 steps -> both v7x TCs busy
        align = 8 // math.gcd(wp, 8)                     # make tm a multiple of 8
        if tile_rows >= align:
            tile_rows = (tile_rows // align) * align
    tile_rows = max(1, min(tile_rows, R))
    n_r = pl.cdiv(R, tile_rows)                 # tail handled by Pallas masking
    tm = tile_rows * wp

    kernel = functools.partial(_expand_norm_kernel, tile_rows=tile_rows,
                               w_pack=wp, out_w=out_w)

    out4 = pl.pallas_call(
        kernel,
        out_shape=jax.ShapeDtypeStruct((R, p, wp, out_w), x.dtype),
        grid_spec=pltpu.PrefetchScalarGridSpec(
            num_scalar_prefetch=0,
            grid=(n_r,),
            in_specs=[
                pl.BlockSpec((tm, in_w), lambda r: (r, 0)),
                # constant-index full blocks: DMA'd once, VMEM-resident
                pl.BlockSpec((in_w, ow_full), lambda r: (0, 0)),
                pl.BlockSpec((ow_full, G), lambda r: (0, 0)),
                pl.BlockSpec((G, ow_full), lambda r: (0, 0)),
                pl.BlockSpec((1, ow_full), lambda r: (0, 0)),
            ],
            out_specs=pl.BlockSpec((tile_rows, p, wp, out_w),
                                   lambda r: (r, 0, 0, 0)),
        ),
        compiler_params=pltpu.CompilerParams(
            dimension_semantics=("parallel",)),
    )(x_pack, w_full, sg, gb, beta_t)

    # (R, p1, wt, (j p2 c)) in row-major order IS (B, 2H, 2W, c_out): free
    # reshape, so no extra HBM pass for the pixel shuffle.
    return out4.reshape(B, p * H, p * W, c_out)


def _reference(x, w_expand, ln_gamma, ln_beta):
    """Pure-JAX reference mirroring the PyTorch PatchExpand2D forward."""
    B, H, W, C = x.shape
    p = DIM_SCALE
    c_out = C // p
    y = jnp.einsum("bhwc,oc->bhwo", x, w_expand)               # Linear, no bias
    y = y.reshape(B, H, W, p, p, c_out)
    y = jnp.transpose(y, (0, 1, 3, 2, 4, 5)).reshape(B, H * p, W * p, c_out)
    mu = jnp.mean(y, axis=-1, keepdims=True)
    var = jnp.mean((y - mu) ** 2, axis=-1, keepdims=True)
    y = (y - mu) / jnp.sqrt(var + LN_EPS)
    return y * ln_gamma + ln_beta


if __name__ == "__main__":
    key = jax.random.PRNGKey(0)
    k_x, k_w, k_g, k_b = jax.random.split(key, 4)

    # Module constructed with dim=16  =>  self.dim = 32 = input channels C.
    dim = 16
    C = dim * DIM_SCALE                 # 32
    B, H, W = 2, 32, 32                 # W chosen so kp*C%128==0 AND W/kp%8==0

    x = jax.random.normal(k_x, (B, H, W, C), dtype=jnp.float32)
    # nn.Linear(dim, 2*dim, bias=False).weight : (2C, C)
    w_expand = (jax.random.normal(k_w, (DIM_SCALE * C, C), dtype=jnp.float32)
                * (1.0 / jnp.sqrt(C)))
    # non-trivial LayerNorm affine params to exercise the gamma/beta folding
    ln_gamma = 1.0 + 0.1 * jax.random.normal(k_g, (C // DIM_SCALE,), jnp.float32)
    ln_beta = 0.1 * jax.random.normal(k_b, (C // DIM_SCALE,), jnp.float32)

    out = jax.block_until_ready(patch_expand_2d(x, w_expand, ln_gamma, ln_beta))
    ref = _reference(x, w_expand, ln_gamma, ln_beta)
    assert out.shape == (B, 2 * H, 2 * W, C // DIM_SCALE), out.shape
    assert jnp.allclose(out, ref, atol=1e-4, rtol=1e-4), \
        float(jnp.max(jnp.abs(out - ref)))

    # Awkward-shape check: W/kp = 3 (non-8-aligned store fallback) and a
    # partial last row-tile (24 image rows, tile_rows=5) — exercises the tail.
    x2 = jax.random.normal(k_x, (B, 12, 12, C), dtype=jnp.float32)
    out2 = jax.block_until_ready(
        patch_expand_2d(x2, w_expand, ln_gamma, ln_beta, tile_rows=5))
    ref2 = _reference(x2, w_expand, ln_gamma, ln_beta)
    assert out2.shape == (B, 24, 24, C // DIM_SCALE), out2.shape
    assert jnp.allclose(out2, ref2, atol=1e-4, rtol=1e-4), \
        float(jnp.max(jnp.abs(out2 - ref2)))

    # bf16 I/O path (halves HBM traffic; accumulation stays f32 in-kernel).
    xb = x.astype(jnp.bfloat16)
    out3 = jax.block_until_ready(patch_expand_2d(xb, w_expand, ln_gamma, ln_beta))
    ref3 = _reference(xb.astype(jnp.float32), w_expand, ln_gamma, ln_beta)
    assert out3.dtype == jnp.bfloat16 and out3.shape == out.shape
    assert jnp.allclose(out3.astype(jnp.float32), ref3, atol=2e-1, rtol=0), \
        float(jnp.max(jnp.abs(out3.astype(jnp.float32) - ref3)))

    print("KERNEL_OK")
</pallas_src>

<mosaic_0001>
module attributes {stable_mosaic.version = 11 : i64} {
  func.func @_expand_norm_kernel(%arg0: i32, %arg1: memref<256x128xf32, #tpu.memory_space<vmem>>, %arg2: memref<128x256xf32, #tpu.memory_space<vmem>>, %arg3: memref<256x16xf32, #tpu.memory_space<vmem>>, %arg4: memref<16x256xf32, #tpu.memory_space<vmem>>, %arg5: memref<1x256xf32, #tpu.memory_space<vmem>>, %arg6: memref<32x2x8x128xf32, #tpu.memory_space<vmem>>) attributes {dimension_semantics = [#tpu.dimension_semantics<parallel>], iteration_bounds = array<i64: 2>, scalar_prefetch = 0 : i64, scratch_operands = 0 : i64, tpu.core_type = #tpu.core_type<tc>, window_params = [{transform_indices = @transform_0, window_bounds = array<i64: 256, 128>}, {pipeline_mode = #tpu.pipeline_mode<synchronous>, transform_indices = @transform_1, window_bounds = array<i64: 128, 256>}, {pipeline_mode = #tpu.pipeline_mode<synchronous>, transform_indices = @transform_2, window_bounds = array<i64: 256, 16>}, {pipeline_mode = #tpu.pipeline_mode<synchronous>, transform_indices = @transform_3, window_bounds = array<i64: 16, 256>}, {pipeline_mode = #tpu.pipeline_mode<synchronous>, transform_indices = @transform_4, window_bounds = array<i64: 1, 256>}, {transform_indices = @transform_5, window_bounds = array<i64: 32, 2, 8, 128>}]} {
    %c0 = arith.constant 0 : index
    %c0_0 = arith.constant 0 : index
    %0 = vector.load %arg1[%c0, %c0_0] : memref<256x128xf32, #tpu.memory_space<vmem>>, vector<256x128xf32>
    %c0_1 = arith.constant 0 : index
    %c0_2 = arith.constant 0 : index
    %1 = vector.load %arg2[%c0_1, %c0_2] : memref<128x256xf32, #tpu.memory_space<vmem>>, vector<128x256xf32>
    %cst = arith.constant dense<0.000000e+00> : vector<256x256xf32>
    %2 = tpu.matmul %0, %1, %cst {dimension_numbers = #tpu.dot_dimension_numbers<[1], [0], [0], [1], [0, 0, 1, 1], [], []>} : vector<256x128xf32>, vector<128x256xf32>, vector<256x256xf32> -> vector<256x256xf32>
    %3 = arith.mulf %2, %2 : vector<256x256xf32>
    %c0_3 = arith.constant 0 : index
    %c0_4 = arith.constant 0 : index
    %4 = vector.load %arg3[%c0_3, %c0_4] : memref<256x16xf32, #tpu.memory_space<vmem>>, vector<256x16xf32>
    %cst_5 = arith.constant dense<0.000000e+00> : vector<256x16xf32>
    %5 = tpu.matmul %3, %4, %cst_5 {dimension_numbers = #tpu.dot_dimension_numbers<[1], [0], [0], [1], [0, 0, 1, 1], [], []>} : vector<256x256xf32>, vector<256x16xf32>, vector<256x16xf32> -> vector<256x16xf32>
    %cst_6 = arith.constant 9.99999974E-6 : f32
    %6 = vector.broadcast %cst_6 : f32 to vector<256x16xf32>
    %7 = arith.addf %5, %6 : vector<256x16xf32>
    %8 = math.rsqrt %7 : vector<256x16xf32>
    %c0_7 = arith.constant 0 : index
    %c0_8 = arith.constant 0 : index
    %9 = vector.load %arg4[%c0_7, %c0_8] : memref<16x256xf32, #tpu.memory_space<vmem>>, vector<16x256xf32>
    %cst_9 = arith.constant dense<0.000000e+00> : vector<256x256xf32>
    %10 = tpu.matmul %8, %9, %cst_9 {dimension_numbers = #tpu.dot_dimension_numbers<[1], [0], [0], [1], [0, 0, 1, 1], [], []>} : vector<256x16xf32>, vector<16x256xf32>, vector<256x256xf32> -> vector<256x256xf32>
    %11 = arith.mulf %2, %10 : vector<256x256xf32>
    %c0_10 = arith.constant 0 : index
    %c0_11 = arith.constant 0 : index
    %12 = vector.load %arg5[%c0_10, %c0_11] : memref<1x256xf32, #tpu.memory_space<vmem>>, vector<1x256xf32>
    %13 = vector.broadcast %12 : vector<1x256xf32> to vector<256x256xf32>
    %14 = arith.addf %11, %13 : vector<256x256xf32>
    %15 = vector.extract_strided_slice %14 {offsets = [0, 0], sizes = [256, 128], strides = [1, 1]} : vector<256x256xf32> to vector<256x128xf32>
    %16 = vector.shape_cast %15 : vector<256x128xf32> to vector<32x8x128xf32>
    %c0_12 = arith.constant 0 : index
    %c0_13 = arith.constant 0 : index
    %c0_14 = arith.constant 0 : index
    %c0_15 = arith.constant 0 : index
    %17 = vector.load %arg6[%c0_12, %c0_13, %c0_14, %c0_15] : memref<32x2x8x128xf32, #tpu.memory_space<vmem>>, vector<32x1x8x128xf32>
    %18 = vector.shape_cast %17 : vector<32x1x8x128xf32> to vector<32x8x128xf32>
    %19 = vector.shape_cast %16 : vector<32x8x128xf32> to vector<32x1x8x128xf32>
    tpu.vector_store %arg6[%c0_12, %c0_13, %c0_14, %c0_15], %19 {strides = array<i32>} : memref<32x2x8x128xf32, #tpu.memory_space<vmem>>, vector<32x1x8x128xf32>,
    %20 = vector.extract_strided_slice %14 {offsets = [0, 128], sizes = [256, 128], strides = [1, 1]} : vector<256x256xf32> to vector<256x128xf32>
    %21 = vector.shape_cast %20 : vector<256x128xf32> to vector<32x8x128xf32>
    %c0_16 = arith.constant 0 : index
    %c1 = arith.constant 1 : index
    %c0_17 = arith.constant 0 : index
    %c0_18 = arith.constant 0 : index
    %22 = vector.load %arg6[%c0_16, %c1, %c0_17, %c0_18] : memref<32x2x8x128xf32, #tpu.memory_space<vmem>>, vector<32x1x8x128xf32>
    %23 = vector.shape_cast %22 : vector<32x1x8x128xf32> to vector<32x8x128xf32>
    %24 = vector.shape_cast %21 : vector<32x8x128xf32> to vector<32x1x8x128xf32>
    tpu.vector_store %arg6[%c0_16, %c1, %c0_17, %c0_18], %24 {strides = array<i32>} : memref<32x2x8x128xf32, #tpu.memory_space<vmem>>, vector<32x1x8x128xf32>,
    return
  }
  func.func @transform_0(%arg0: i32) -> (i32, i32) {
    %c0_i32 = arith.constant 0 : i32
    %c0_i32_0 = arith.constant 0 : i32
    return %arg0, %c0_i32 : i32, i32
  }
  func.func @transform_1(%arg0: i32) -> (i32, i32) {
    %c0_i32 = arith.constant 0 : i32
    %c0_i32_0 = arith.constant 0 : i32
    %c0_i32_1 = arith.constant 0 : i32
    return %c0_i32, %c0_i32_0 : i32, i32
  }
  func.func @transform_2(%arg0: i32) -> (i32, i32) {
    %c0_i32 = arith.constant 0 : i32
    %c0_i32_0 = arith.constant 0 : i32
    %c0_i32_1 = arith.constant 0 : i32
    return %c0_i32, %c0_i32_0 : i32, i32
  }
  func.func @transform_3(%arg0: i32) -> (i32, i32) {
    %c0_i32 = arith.constant 0 : i32
    %c0_i32_0 = arith.constant 0 : i32
    %c0_i32_1 = arith.constant 0 : i32
    return %c0_i32, %c0_i32_0 : i32, i32
  }
  func.func @transform_4(%arg0: i32) -> (i32, i32) {
    %c0_i32 = arith.constant 0 : i32
    %c0_i32_0 = arith.constant 0 : i32
    %c0_i32_1 = arith.constant 0 : i32
    return %c0_i32, %c0_i32_0 : i32, i32
  }
  func.func @transform_5(%arg0: i32) -> (i32, i32, i32, i32) {
    %c0_i32 = arith.constant 0 : i32
    %c0_i32_0 = arith.constant 0 : i32
    %c0_i32_1 = arith.constant 0 : i32
    %c0_i32_2 = arith.constant 0 : i32
    return %arg0, %c0_i32, %c0_i32_0, %c0_i32_1 : i32, i32, i32, i32
  }
}

</mosaic_0001>

<llo_original>
// kernel: tpu_custom_call.1
$region0: #{tpu_custom_call.1}
  #allocation0 [shape = 'u32[]', space=smem, size = 0x4, offset = 0x4, fixed_abs, tag = 'smem constant byte address 0x4 - core index']
  #allocation1 [shape = 'u32[144,128]{1,0:T(1,128)}', space=vmem, size = 0x12000, scoped, tag = 'internal scratch']
  %s0 = inlined_call_operand.hbm [shape: f32[512,128], index: 0, kind: input, shape index: {}]
  %s1 = inlined_call_operand.vmem [shape: f32[128,256], index: 1, kind: input, shape index: {}]
  %s2 = inlined_call_operand.vmem [shape: f32[256,16], index: 2, kind: input, shape index: {}]
  %s3 = inlined_call_operand.vmem [shape: f32[16,256], index: 3, kind: input, shape index: {}]
  %s4 = inlined_call_operand.vmem [shape: f32[1,256], index: 4, kind: input, shape index: {}]
  %s5 = inlined_call_operand.hbm [shape: f32[64,2,8,128], index: 5, kind: output, shape index: {}]
  %s6 = sld [smem:[#allocation0]]
  $region57: #{tpu_custom_call.1} parent=0
    _
  %s8 = ssub.s32 1, %s6
  %s9 = scalar_select 0, %s8, %s6
  $region1: #{tpu_custom_call.1} parent=0
    #allocation2 [shape = 'u8[262144]{0}', space=vmem, size = 0x40000, scoped, tag = 'input window, operand 0']
    #allocation3 [shape = 's32[2]{0}', space=sflag, size = 0x8, scoped, tag = 'scoped memory for tpu_custom_call.1']
    #allocation4 [shape = 's32[2]{0}', space=sflag, size = 0x8, scoped, tag = 'scoped memory for tpu_custom_call.1']
    #allocation5 [shape = 'u8[524288]{0}', space=vmem, size = 0x80000, scoped, tag = 'output window, operand 0']
    %10 = vsyncpa [#allocation3], 0
    %s11 = scalar_lea.sflag [#allocation3], 1
    %12 = vsyncpa %s11, 0
    %13 = vsyncpa [#allocation4], 0
    %s14 = scalar_lea.sflag [#allocation4], 1
    %15 = vsyncpa %s14, 0
    loop: start=0, step=1, limit=4
    $region2: #{tpu_custom_call.1} parent=1 // loop_pre_header
      _
    $region3: #{tpu_custom_call.1} parent=1 // loop_header
      %s17 = sphi 0, %s21
      %p18 = scmp.ge.s32.totalorder %s17, 4
      %s27 = sphi 0, %s29
      %s30 = sphi 0, %s27
      %s31 = sphi 0, %s30
      %s47 = sphi 0, %s31
      %s51 = sphi 0, %s51
      %s53 = sphi 0, %s51
      %s54 = sphi 0, %s53
      %s68 = sphi 0, %s54
      %s72 = sphi 0, %s72
      %s74 = sphi 0, %s72
      %s75 = sphi 0, %s74
      %s89 = sphi 0, %s75
      %s93 = sphi 0, %s93
      %s95 = sphi 0, %s93
      %s96 = sphi 0, %s95
      %s110 = sphi 0, %s96
      %s114 = sphi 0, %s114
      %s116 = sphi 0, %s114
      %s117 = sphi 0, %s116
      %s131 = sphi 0, %s117
      %s137 = sphi 0, %s139
      %s140 = sphi 0, %s137
      %s141 = sphi 0, %s140
      %s157 = sphi 0, %s141
    $region4: #{tpu_custom_call.1} parent=1 // loop_header_branch
      %20 = sbr.rel (%p18) target = $region8
    $region5: #{tpu_custom_call.1} parent=1 // loop_body
      %s22 = ssub.s32 %s17, 1
      %s23 = ssub.s32 %s17, 2
      %s24 = sadd.s32 %s17, 1
      %s25 = ssub.s32 %s17, %s24
      %p26 = scmp.eq.s32.totalorder %s25, 0
      %s28 = sadd.s32 %s27, 1
      %s29 = scalar_select %p26, %s27, %s28
      %p32 = pneg %p26
      %p33 = scmp.eq.s32.totalorder %s17, 1
      %p34 = por %p32, %p33
      %p35 = scmp.ne.s32.totalorder %s27, %s30
      %p36 = scmp.eq.s32.totalorder %s17, 0
      %p37 = por %p35, %p36
      %p38 = scmp.ne.s32.totalorder %s27, %s30
      %p39 = scmp.eq.s32.totalorder %s22, 1
      %p40 = por %p38, %p39
      %p41 = scmp.ne.s32.totalorder %s30, %s31
      %p42 = scmp.eq.s32.totalorder %s22, 0
      %p43 = por %p41, %p42
      %p44 = scmp.ne.s32.totalorder %s30, %s31
      %p45 = scmp.eq.s32.totalorder %s23, 1
      %p46 = por %p44, %p45
      %p48 = scmp.ne.s32.totalorder %s31, %s47
      %p49 = scmp.eq.s32.totalorder %s23, 0
      %p50 = por %p48, %p49
      %s52 = sadd.s32 %s51, 1
      %p55 = scmp.eq.s32.totalorder %s17, 1
      %p56 = scmp.ne.s32.totalorder %s51, %s53
      %p57 = scmp.eq.s32.totalorder %s17, 0
      %p58 = por %p56, %p57
      %p59 = scmp.ne.s32.totalorder %s51, %s53
      %p60 = scmp.eq.s32.totalorder %s22, 1
      %p61 = por %p59, %p60
      %p62 = scmp.ne.s32.totalorder %s53, %s54
      %p63 = scmp.eq.s32.totalorder %s22, 0
      %p64 = por %p62, %p63
      %p65 = scmp.ne.s32.totalorder %s53, %s54
      %p66 = scmp.eq.s32.totalorder %s23, 1
      %p67 = por %p65, %p66
      %p69 = scmp.ne.s32.totalorder %s54, %s68
      %p70 = scmp.eq.s32.totalorder %s23, 0
      %p71 = por %p69, %p70
      %s73 = sadd.s32 %s72, 1
      %p76 = scmp.eq.s32.totalorder %s17, 1
      %p77 = scmp.ne.s32.totalorder %s72, %s74
      %p78 = scmp.eq.s32.totalorder %s17, 0
      %p79 = por %p77, %p78
      %p80 = scmp.ne.s32.totalorder %s72, %s74
      %p81 = scmp.eq.s32.totalorder %s22, 1
      %p82 = por %p80, %p81
      %p83 = scmp.ne.s32.totalorder %s74, %s75
      %p84 = scmp.eq.s32.totalorder %s22, 0
      %p85 = por %p83, %p84
      %p86 = scmp.ne.s32.totalorder %s74, %s75
      %p87 = scmp.eq.s32.totalorder %s23, 1
      %p88 = por %p86, %p87
      %p90 = scmp.ne.s32.totalorder %s75, %s89
      %p91 = scmp.eq.s32.totalorder %s23, 0
      %p92 = por %p90, %p91
      %s94 = sadd.s32 %s93, 1
      %p97 = scmp.eq.s32.totalorder %s17, 1
      %p98 = scmp.ne.s32.totalorder %s93, %s95
      %p99 = scmp.eq.s32.totalorder %s17, 0
      %p100 = por %p98, %p99
      %p101 = scmp.ne.s32.totalorder %s93, %s95
      %p102 = scmp.eq.s32.totalorder %s22, 1
      %p103 = por %p101, %p102
      %p104 = scmp.ne.s32.totalorder %s95, %s96
      %p105 = scmp.eq.s32.totalorder %s22, 0
      %p106 = por %p104, %p105
      %p107 = scmp.ne.s32.totalorder %s95, %s96
      %p108 = scmp.eq.s32.totalorder %s23, 1
      %p109 = por %p107, %p108
      %p111 = scmp.ne.s32.totalorder %s96, %s110
      %p112 = scmp.eq.s32.totalorder %s23, 0
      %p113 = por %p111, %p112
      %s115 = sadd.s32 %s114, 1
      %p118 = scmp.eq.s32.totalorder %s17, 1
      %p119 = scmp.ne.s32.totalorder %s114, %s116
      %p120 = scmp.eq.s32.totalorder %s17, 0
      %p121 = por %p119, %p120
      %p122 = scmp.ne.s32.totalorder %s114, %s116
      %p123 = scmp.eq.s32.totalorder %s22, 1
      %p124 = por %p122, %p123
      %p125 = scmp.ne.s32.totalorder %s116, %s117
      %p126 = scmp.eq.s32.totalorder %s22, 0
      %p127 = por %p125, %p126
      %p128 = scmp.ne.s32.totalorder %s116, %s117
      %p129 = scmp.eq.s32.totalorder %s23, 1
      %p130 = por %p128, %p129
      %p132 = scmp.ne.s32.totalorder %s117, %s131
      %p133 = scmp.eq.s32.totalorder %s23, 0
      %p134 = por %p132, %p133
      %s135 = ssub.s32 %s17, %s24
      %p136 = scmp.eq.s32.totalorder %s135, 0
      %s138 = sadd.s32 %s137, 1
      %s139 = scalar_select %p136, %s137, %s138
      %p142 = pneg %p136
      %p143 = scmp.eq.s32.totalorder %s17, 1
      %p144 = por %p142, %p143
      %p145 = scmp.ne.s32.totalorder %s137, %s140
      %p146 = scmp.eq.s32.totalorder %s17, 0
      %p147 = por %p145, %p146
      %p148 = scmp.ne.s32.totalorder %s137, %s140
      %p149 = scmp.eq.s32.totalorder %s22, 1
      %p150 = por %p148, %p149
      %p151 = scmp.ne.s32.totalorder %s140, %s141
      %p152 = scmp.eq.s32.totalorder %s22, 0
      %p153 = por %p151, %p152
      %p154 = scmp.ne.s32.totalorder %s140, %s141
      %p155 = scmp.eq.s32.totalorder %s23, 1
      %p156 = por %p154, %p155
      %p158 = scmp.ne.s32.totalorder %s141, %s157
      %p159 = scmp.eq.s32.totalorder %s23, 0
      %p160 = por %p158, %p159
      %p161 = scmp.le.s32.totalorder 1, %s17
      %p162 = scmp.lt.s32.totalorder %s17, 3
      %p163 = pnand %p161, %p162
      %p164 = pneg %p163
      // Predicated region
      $region9: #{tpu_custom_call.1} parent=5 // pred_check
        _
      $region10: #{tpu_custom_call.1} parent=5 // pred_check_branch
        %166 = sbr.rel (%p163) target = $region12
      $region11: #{tpu_custom_call.1} parent=5 // pred_region
        %s167 = ssub.s32 %s17, 1
        // Predicated region
        $region13: #{tpu_custom_call.1} parent=11 // pred_check
          %p168 = pneg %p64
        $region14: #{tpu_custom_call.1} parent=11 // pred_check_branch
          %170 = sbr.rel (%p168) target = $region16
        $region15: #{tpu_custom_call.1} parent=11 // pred_region
          _
        $region16: #{tpu_custom_call.1} parent=11 // pred_fallthru
          _
        // Predicated region
        $region17: #{tpu_custom_call.1} parent=11 // pred_check
          %p171 = pneg %p85
        $region18: #{tpu_custom_call.1} parent=11 // pred_check_branch
          %173 = sbr.rel (%p171) target = $region20
        $region19: #{tpu_custom_call.1} parent=11 // pred_region
          _
        $region20: #{tpu_custom_call.1} parent=11 // pred_fallthru
          _
        // Predicated region
        $region21: #{tpu_custom_call.1} parent=11 // pred_check
          %p174 = pneg %p106
        $region22: #{tpu_custom_call.1} parent=11 // pred_check_branch
          %176 = sbr.rel (%p174) target = $region24
        $region23: #{tpu_custom_call.1} parent=11 // pred_region
          _
        $region24: #{tpu_custom_call.1} parent=11 // pred_fallthru
          _
        // Predicated region
        $region25: #{tpu_custom_call.1} parent=11 // pred_check
          %p177 = pneg %p127
        $region26: #{tpu_custom_call.1} parent=11 // pred_check_branch
          %179 = sbr.rel (%p177) target = $region28
        $region27: #{tpu_custom_call.1} parent=11 // pred_region
          _
        $region28: #{tpu_custom_call.1} parent=11 // pred_fallthru
          _
      $region12: #{tpu_custom_call.1} parent=5 // pred_fallthru
        _
      %p180 = scmp.lt.s32.totalorder %s17, 2
      // Predicated region
      $region29: #{tpu_custom_call.1} parent=5 // pred_check
        %p181 = pneg %p180
      $region30: #{tpu_custom_call.1} parent=5 // pred_check_branch
        %183 = sbr.rel (%p181) target = $region32
      $region31: #{tpu_custom_call.1} parent=5 // pred_region
        // Predicated region
        $region33: #{tpu_custom_call.1} parent=31 // pred_check
          %p184 = pneg %p37
        $region34: #{tpu_custom_call.1} parent=31 // pred_check_branch
          %186 = sbr.rel (%p184) target = $region36
        $region35: #{tpu_custom_call.1} parent=31 // pred_region
          %s187 = sand.u32 %s27, 1
          %s188 = scalar_lea.sflag [#allocation3], %s187
          %s189 = sand.u32 %s27, 1
          %s190 = smul.addr %s189, 256
          %s191 = scalar_lea.vmem [#allocation2], %s190
          %s192 = smul.u32 32, %s17
          %s194 = ssub.s32 4096, 4096
          %195 = vsyncadd %s188, %s194
          %s196 = smul.addr %s192, 128
          %s197 = scalar_lea.hbm %s0, %s196
          %s198 = sshll.u32 %s191, 4
          %s199 = int_to_ptr.vmem [resolvable:$true] %s198
          %204 = dma.hbm_to_vmem [thread:$0]  %s197, 4096, %s199, %s188, 128, 128, 8
        $region36: #{tpu_custom_call.1} parent=31 // pred_fallthru
          _
      $region32: #{tpu_custom_call.1} parent=5 // pred_fallthru
        _
      %p205 = scmp.le.s32.totalorder 1, %s17
      %p206 = scmp.lt.s32.totalorder %s17, 3
      %p207 = pnand %p205, %p206
      %p208 = pneg %p207
      // Predicated region
      $region37: #{tpu_custom_call.1} parent=5 // pred_check
        _
      $region38: #{tpu_custom_call.1} parent=5 // pred_check_branch
        %210 = sbr.rel (%p207) target = $region40
      $region39: #{tpu_custom_call.1} parent=5 // pred_region
        %s211 = ssub.s32 %s17, 1
        %s212 = sand.u32 %s30, 1
        %s213 = scalar_lea.sflag [#allocation3], %s212
        %s214 = sand.u32 %s30, 1
        %s215 = smul.addr %s214, 256
        %s216 = scalar_lea.vmem [#allocation2], %s215
        // Predicated region
        $region41: #{tpu_custom_call.1} parent=39 // pred_check
          %p217 = pneg %p43
        $region42: #{tpu_custom_call.1} parent=39 // pred_check_branch
          %219 = sbr.rel (%p217) target = $region44
        $region43: #{tpu_custom_call.1} parent=39 // pred_region
          %220 = dma.done %s213, 4096
        $region44: #{tpu_custom_call.1} parent=39 // pred_fallthru
          _
        %s221 = sand.u32 %s30, 1
        %s222 = scalar_lea.sflag [#allocation3], %s221
        %s223 = sand.u32 %s30, 1
        %s224 = smul.addr %s223, 256
        %s225 = scalar_lea.vmem [#allocation2], %s224
        %p226 = pneg %p43
        %p227 = pneg %p40
        %p228 = pneg %p64
        %p229 = pneg %p61
        %p230 = pneg %p85
        %p231 = pneg %p82
        %p232 = pneg %p106
        %p233 = pneg %p103
        %p234 = pneg %p127
        %p235 = pneg %p124
        %p236 = pneg %p153
        %p237 = pneg %p150
        %s238 = sand.u32 %s140, 1
        %s239 = scalar_lea.sflag [#allocation4], %s238
        %s240 = sand.u32 %s140, 1
        %s241 = smul.addr %s240, 512
        %s242 = scalar_lea.vmem [#allocation5], %s241
        %s243 = smul.u32 32, %s22
        %s244 = smul.u32 32, %s22
        %v245 = vld [vmem:[%s216] sm:$0xff]
        %v246 = vld [vmem:[%s216 + $0x8] sm:$0xff]
        %v247 = vld [vmem:[%s216 + $0x10] sm:$0xff]
        %v248 = vld [vmem:[%s216 + $0x18] sm:$0xff]
        %v249 = vld [vmem:[%s216 + $0x20] sm:$0xff]
        %v250 = vld [vmem:[%s216 + $0x28] sm:$0xff]
        %v251 = vld [vmem:[%s216 + $0x30] sm:$0xff]
        %v252 = vld [vmem:[%s216 + $0x38] sm:$0xff]
        %v253 = vld [vmem:[%s216 + $0x40] sm:$0xff]
        %v254 = vld [vmem:[%s216 + $0x48] sm:$0xff]
        %v255 = vld [vmem:[%s216 + $0x50] sm:$0xff]
        %v256 = vld [vmem:[%s216 + $0x58] sm:$0xff]
        %v257 = vld [vmem:[%s216 + $0x60] sm:$0xff]
        %v258 = vld [vmem:[%s216 + $0x68] sm:$0xff]
        %v259 = vld [vmem:[%s216 + $0x70] sm:$0xff]
        %v260 = vld [vmem:[%s216 + $0x78] sm:$0xff]
        %v261 = vld [vmem:[%s216 + $0x80] sm:$0xff]
        %v262 = vld [vmem:[%s216 + $0x88] sm:$0xff]
        %v263 = vld [vmem:[%s216 + $0x90] sm:$0xff]
        %v264 = vld [vmem:[%s216 + $0x98] sm:$0xff]
        %v265 = vld [vmem:[%s216 + $0xa0] sm:$0xff]
        %v266 = vld [vmem:[%s216 + $0xa8] sm:$0xff]
        %v267 = vld [vmem:[%s216 + $0xb0] sm:$0xff]
        %v268 = vld [vmem:[%s216 + $0xb8] sm:$0xff]
        %v269 = vld [vmem:[%s216 + $0xc0] sm:$0xff]
        %v270 = vld [vmem:[%s216 + $0xc8] sm:$0xff]
        %v271 = vld [vmem:[%s216 + $0xd0] sm:$0xff]
        %v272 = vld [vmem:[%s216 + $0xd8] sm:$0xff]
        %v273 = vld [vmem:[%s216 + $0xe0] sm:$0xff]
        %v274 = vld [vmem:[%s216 + $0xe8] sm:$0xff]
        %v275 = vld [vmem:[%s216 + $0xf0] sm:$0xff]
        %v276 = vld [vmem:[%s216 + $0xf8] sm:$0xff]
        %v277 = vld [vmem:[%s1] sm:$0xff]
        %v278 = vld [vmem:[%s1 + $0x8] sm:$0xff]
        %v279 = vld [vmem:[%s1 + $0x10] sm:$0xff]
        %v280 = vld [vmem:[%s1 + $0x18] sm:$0xff]
        %v281 = vld [vmem:[%s1 + $0x20] sm:$0xff]
        %v282 = vld [vmem:[%s1 + $0x28] sm:$0xff]
        %v283 = vld [vmem:[%s1 + $0x30] sm:$0xff]
        %v284 = vld [vmem:[%s1 + $0x38] sm:$0xff]
        %v285 = vld [vmem:[%s1 + $0x40] sm:$0xff]
        %v286 = vld [vmem:[%s1 + $0x48] sm:$0xff]
        %v287 = vld [vmem:[%s1 + $0x50] sm:$0xff]
        %v288 = vld [vmem:[%s1 + $0x58] sm:$0xff]
        %v289 = vld [vmem:[%s1 + $0x60] sm:$0xff]
        %v290 = vld [vmem:[%s1 + $0x68] sm:$0xff]
        %v291 = vld [vmem:[%s1 + $0x70] sm:$0xff]
        %v292 = vld [vmem:[%s1 + $0x78] sm:$0xff]
        %v293 = vld [vmem:[%s1 + $0x80] sm:$0xff]
        %v294 = vld [vmem:[%s1 + $0x88] sm:$0xff]
        %v295 = vld [vmem:[%s1 + $0x90] sm:$0xff]
        %v296 = vld [vmem:[%s1 + $0x98] sm:$0xff]
        %v297 = vld [vmem:[%s1 + $0xa0] sm:$0xff]
        %v298 = vld [vmem:[%s1 + $0xa8] sm:$0xff]
        %v299 = vld [vmem:[%s1 + $0xb0] sm:$0xff]
        %v300 = vld [vmem:[%s1 + $0xb8] sm:$0xff]
        %v301 = vld [vmem:[%s1 + $0xc0] sm:$0xff]
        %v302 = vld [vmem:[%s1 + $0xc8] sm:$0xff]
        %v303 = vld [vmem:[%s1 + $0xd0] sm:$0xff]
        %v304 = vld [vmem:[%s1 + $0xd8] sm:$0xff]
        %v305 = vld [vmem:[%s1 + $0xe0] sm:$0xff]
        %v306 = vld [vmem:[%s1 + $0xe8] sm:$0xff]
        %v307 = vld [vmem:[%s1 + $0xf0] sm:$0xff]
        %v308 = vld [vmem:[%s1 + $0xf8] sm:$0xff]
        %309 = vmatprep.subr.mxu0 %v278
        %310 = vmatpush1.msra.mxu0 %v277
        %311 = vmatprep.subr.mxu0 %v280
        %312 = vmatpush1.msra.mxu0 %v279
        %313 = vmatprep.subr.mxu0 %v282
        %314 = vmatpush1.msra.mxu0 %v281
        %315 = vmatprep.subr.mxu0 %v284
        %316 = vmatpush1.msra.mxu0 %v283
        %317 = vmatprep.subr.mxu0 %v286
        %318 = vmatpush1.msra.mxu0 %v285
        %319 = vmatprep.subr.mxu0 %v288
        %320 = vmatpush1.msra.mxu0 %v287
        %321 = vmatprep.subr.mxu0 %v290
        %322 = vmatpush1.msra.mxu0 %v289
        %323 = vmatprep.subr.mxu0 %v292
        %324 = vmatpush1.msra.mxu0 %v291
        %325 = vmatprep.subr.mxu0 %v294
        %326 = vmatpush1.msra.mxu0 %v293
        %327 = vmatprep.subr.mxu0 %v296
        %328 = vmatpush1.msra.mxu0 %v295
        %329 = vmatprep.subr.mxu0 %v298
        %330 = vmatpush1.msra.mxu0 %v297
        %331 = vmatprep.subr.mxu0 %v300
        %332 = vmatpush1.msra.mxu0 %v299
        %333 = vmatprep.subr.mxu0 %v302
        %334 = vmatpush1.msra.mxu0 %v301
        %335 = vmatprep.subr.mxu0 %v304
        %336 = vmatpush1.msra.mxu0 %v303
        %337 = vmatprep.subr.mxu0 %v306
        %338 = vmatpush1.msra.mxu0 %v305
        %339 = vmatprep.subr.mxu0 %v308
        %340 = vmatpush1.msra.mxu0 %v307
        %341 = vmatprep.subr.mxu0 0.0
        %342 = vmatpush1.msra.mxu0 0.0
        %343 = vmatprep.subr.mxu0 0.0
        %344 = vmatpush1.msra.mxu0 0.0
        %345 = vmatprep.subr.mxu0 0.0
        %346 = vmatpush1.msra.mxu0 0.0
        %347 = vmatprep.subr.mxu0 0.0
        %348 = vmatpush1.msra.mxu0 0.0
        %349 = vmatprep.subr.mxu0 0.0
        %350 = vmatpush1.msra.mxu0 0.0
        %351 = vmatprep.subr.mxu0 0.0
        %352 = vmatpush1.msra.mxu0 0.0
        %353 = vmatprep.subr.mxu0 0.0
        %354 = vmatpush1.msra.mxu0 0.0
        %355 = vmatprep.subr.mxu0 0.0
        %356 = vmatpush1.msra.mxu0 0.0
        %357 = vmatprep.subr.mxu0 0.0
        %358 = vmatpush1.msra.mxu0 0.0
        %359 = vmatprep.subr.mxu0 0.0
        %360 = vmatpush1.msra.mxu0 0.0
        %361 = vmatprep.subr.mxu0 0.0
        %362 = vmatpush1.msra.mxu0 0.0
        %363 = vmatprep.subr.mxu0 0.0
        %364 = vmatpush1.msra.mxu0 0.0
        %365 = vmatprep.subr.mxu0 0.0
        %366 = vmatpush1.msra.mxu0 0.0
        %367 = vmatprep.subr.mxu0 0.0
        %368 = vmatpush1.msra.mxu0 0.0
        %369 = vmatprep.subr.mxu0 0.0
        %370 = vmatpush1.msra.mxu0 0.0
        %371 = vmatprep.subr.mxu0 0.0
        %372 = vmatpush1.msra.mxu0 0.0
        %373 = vmatprep.mubr.f32.mxu0 0.0
        %374 = vmatmul.mubr.f32.gmra.mrb[0].mxu0 %v245
        %v375 = vpop.f32.mrb[0].mxu0
        %v376 = vadd.f32 0.0, %v375
        %v377 = vpop.f32.mrb[0].mxu0
        %v378 = vadd.f32 0.0, %v377
        %379 = vmatprep.mubr.f32.mxu0 0.0
        %380 = vmatmul.mubr.f32.gmra.mrb[0].mxu0 %v246
        %v381 = vpop.f32.mrb[0].mxu0
        %v382 = vadd.f32 0.0, %v381
        %v383 = vpop.f32.mrb[0].mxu0
        %v384 = vadd.f32 0.0, %v383
        %385 = vmatprep.mubr.f32.mxu0 0.0
        %386 = vmatmul.mubr.f32.gmra.mrb[0].mxu0 %v247
        %v387 = vpop.f32.mrb[0].mxu0
        %v388 = vadd.f32 0.0, %v387
        %v389 = vpop.f32.mrb[0].mxu0
        %v390 = vadd.f32 0.0, %v389
        %391 = vmatprep.mubr.f32.mxu0 0.0
        %392 = vmatmul.mubr.f32.gmra.mrb[0].mxu0 %v248
        %v393 = vpop.f32.mrb[0].mxu0
        %v394 = vadd.f32 0.0, %v393
        %v395 = vpop.f32.mrb[0].mxu0
        %v396 = vadd.f32 0.0, %v395
        %397 = vmatprep.mubr.f32.mxu0 0.0
        %398 = vmatmul.mubr.f32.gmra.mrb[0].mxu0 %v249
        %v399 = vpop.f32.mrb[0].mxu0
        %v400 = vadd.f32 0.0, %v399
        %v401 = vpop.f32.mrb[0].mxu0
        %v402 = vadd.f32 0.0, %v401
        %403 = vmatprep.mubr.f32.mxu0 0.0
        %404 = vmatmul.mubr.f32.gmra.mrb[0].mxu0 %v250
        %v405 = vpop.f32.mrb[0].mxu0
        %v406 = vadd.f32 0.0, %v405
        %v407 = vpop.f32.mrb[0].mxu0
        %v408 = vadd.f32 0.0, %v407
        %409 = vmatprep.mubr.f32.mxu0 0.0
        %410 = vmatmul.mubr.f32.gmra.mrb[0].mxu0 %v251
        %v411 = vpop.f32.mrb[0].mxu0
        %v412 = vadd.f32 0.0, %v411
        %v413 = vpop.f32.mrb[0].mxu0
        %v414 = vadd.f32 0.0, %v413
        %415 = vmatprep.mubr.f32.mxu0 0.0
        %416 = vmatmul.mubr.f32.gmra.mrb[0].mxu0 %v252
        %v417 = vpop.f32.mrb[0].mxu0
        %v418 = vadd.f32 0.0, %v417
        %v419 = vpop.f32.mrb[0].mxu0
        %v420 = vadd.f32 0.0, %v419
        %421 = vmatprep.mubr.f32.mxu0 0.0
        %422 = vmatmul.mubr.f32.gmra.mrb[0].mxu0 %v253
        %v423 = vpop.f32.mrb[0].mxu0
        %v424 = vadd.f32 0.0, %v423
        %v425 = vpop.f32.mrb[0].mxu0
        %v426 = vadd.f32 0.0, %v425
        %427 = vmatprep.mubr.f32.mxu0 0.0
        %428 = vmatmul.mubr.f32.gmra.mrb[0].mxu0 %v254
        %v429 = vpop.f32.mrb[0].mxu0
        %v430 = vadd.f32 0.0, %v429
        %v431 = vpop.f32.mrb[0].mxu0
        %v432 = vadd.f32 0.0, %v431
        %433 = vmatprep.mubr.f32.mxu0 0.0
        %434 = vmatmul.mubr.f32.gmra.mrb[0].mxu0 %v255
        %v435 = vpop.f32.mrb[0].mxu0
        %v436 = vadd.f32 0.0, %v435
        %v437 = vpop.f32.mrb[0].mxu0
        %v438 = vadd.f32 0.0, %v437
        %439 = vmatprep.mubr.f32.mxu0 0.0
        %440 = vmatmul.mubr.f32.gmra.mrb[0].mxu0 %v256
        %v441 = vpop.f32.mrb[0].mxu0
        %v442 = vadd.f32 0.0, %v441
        %v443 = vpop.f32.mrb[0].mxu0
        %v444 = vadd.f32 0.0, %v443
        %445 = vmatprep.mubr.f32.mxu0 0.0
        %446 = vmatmul.mubr.f32.gmra.mrb[0].mxu0 %v257
        %v447 = vpop.f32.mrb[0].mxu0
        %v448 = vadd.f32 0.0, %v447
        %v449 = vpop.f32.mrb[0].mxu0
        %v450 = vadd.f32 0.0, %v449
        %451 = vmatprep.mubr.f32.mxu0 0.0
        %452 = vmatmul.mubr.f32.gmra.mrb[0].mxu0 %v258
        %v453 = vpop.f32.mrb[0].mxu0
        %v454 = vadd.f32 0.0, %v453
        %v455 = vpop.f32.mrb[0].mxu0
        %v456 = vadd.f32 0.0, %v455
        %457 = vmatprep.mubr.f32.mxu0 0.0
        %458 = vmatmul.mubr.f32.gmra.mrb[0].mxu0 %v259
        %v459 = vpop.f32.mrb[0].mxu0
        %v460 = vadd.f32 0.0, %v459
        %v461 = vpop.f32.mrb[0].mxu0
        %v462 = vadd.f32 0.0, %v461
        %463 = vmatprep.mubr.f32.mxu0 0.0
        %464 = vmatmul.mubr.f32.gmra.mrb[0].mxu0 %v260
        %v465 = vpop.f32.mrb[0].mxu0
        %v466 = vadd.f32 0.0, %v465
        %v467 = vpop.f32.mrb[0].mxu0
        %v468 = vadd.f32 0.0, %v467
        %469 = vmatprep.mubr.f32.mxu0 0.0
        %470 = vmatmul.mubr.f32.gmra.mrb[0].mxu0 %v261
        %v471 = vpop.f32.mrb[0].mxu0
        %v472 = vadd.f32 0.0, %v471
        %v473 = vpop.f32.mrb[0].mxu0
        %v474 = vadd.f32 0.0, %v473
        %475 = vmatprep.mubr.f32.mxu0 0.0
        %476 = vmatmul.mubr.f32.gmra.mrb[0].mxu0 %v262
        %v477 = vpop.f32.mrb[0].mxu0
        %v478 = vadd.f32 0.0, %v477
        %v479 = vpop.f32.mrb[0].mxu0
        %v480 = vadd.f32 0.0, %v479
        %481 = vmatprep.mubr.f32.mxu0 0.0
        %482 = vmatmul.mubr.f32.gmra.mrb[0].mxu0 %v263
        %v483 = vpop.f32.mrb[0].mxu0
        %v484 = vadd.f32 0.0, %v483
        %v485 = vpop.f32.mrb[0].mxu0
        %v486 = vadd.f32 0.0, %v485
        %487 = vmatprep.mubr.f32.mxu0 0.0
        %488 = vmatmul.mubr.f32.gmra.mrb[0].mxu0 %v264
        %v489 = vpop.f32.mrb[0].mxu0
        %v490 = vadd.f32 0.0, %v489
        %v491 = vpop.f32.mrb[0].mxu0
        %v492 = vadd.f32 0.0, %v491
        %493 = vmatprep.mubr.f32.mxu0 0.0
        %494 = vmatmul.mubr.f32.gmra.mrb[0].mxu0 %v265
        %v495 = vpop.f32.mrb[0].mxu0
        %v496 = vadd.f32 0.0, %v495
        %v497 = vpop.f32.mrb[0].mxu0
        %v498 = vadd.f32 0.0, %v497
        %499 = vmatprep.mubr.f32.mxu0 0.0
        %500 = vmatmul.mubr.f32.gmra.mrb[0].mxu0 %v266
        %v501 = vpop.f32.mrb[0].mxu0
        %v502 = vadd.f32 0.0, %v501
        %v503 = vpop.f32.mrb[0].mxu0
        %v504 = vadd.f32 0.0, %v503
        %505 = vmatprep.mubr.f32.mxu0 0.0
        %506 = vmatmul.mubr.f32.gmra.mrb[0].mxu0 %v267
        %v507 = vpop.f32.mrb[0].mxu0
        %v508 = vadd.f32 0.0, %v507
        %v509 = vpop.f32.mrb[0].mxu0
        %v510 = vadd.f32 0.0, %v509
        %511 = vmatprep.mubr.f32.mxu0 0.0
        %512 = vmatmul.mubr.f32.gmra.mrb[0].mxu0 %v268
        %v513 = vpop.f32.mrb[0].mxu0
        %v514 = vadd.f32 0.0, %v513
        %v515 = vpop.f32.mrb[0].mxu0
        %v516 = vadd.f32 0.0, %v515
        %517 = vmatprep.mubr.f32.mxu0 0.0
        %518 = vmatmul.mubr.f32.gmra.mrb[0].mxu0 %v269
        %v519 = vpop.f32.mrb[0].mxu0
        %v520 = vadd.f32 0.0, %v519
        %v521 = vpop.f32.mrb[0].mxu0
        %v522 = vadd.f32 0.0, %v521
        %523 = vmatprep.mubr.f32.mxu0 0.0
        %524 = vmatmul.mubr.f32.gmra.mrb[0].mxu0 %v270
        %v525 = vpop.f32.mrb[0].mxu0
        %v526 = vadd.f32 0.0, %v525
        %v527 = vpop.f32.mrb[0].mxu0
        %v528 = vadd.f32 0.0, %v527
        %529 = vmatprep.mubr.f32.mxu0 0.0
        %530 = vmatmul.mubr.f32.gmra.mrb[0].mxu0 %v271
        %v531 = vpop.f32.mrb[0].mxu0
        %v532 = vadd.f32 0.0, %v531
        %v533 = vpop.f32.mrb[0].mxu0
        %v534 = vadd.f32 0.0, %v533
        %535 = vmatprep.mubr.f32.mxu0 0.0
        %536 = vmatmul.mubr.f32.gmra.mrb[0].mxu0 %v272
        %v537 = vpop.f32.mrb[0].mxu0
        %v538 = vadd.f32 0.0, %v537
        %v539 = vpop.f32.mrb[0].mxu0
        %v540 = vadd.f32 0.0, %v539
        %541 = vmatprep.mubr.f32.mxu0 0.0
        %542 = vmatmul.mubr.f32.gmra.mrb[0].mxu0 %v273
        %v543 = vpop.f32.mrb[0].mxu0
        %v544 = vadd.f32 0.0, %v543
        %v545 = vpop.f32.mrb[0].mxu0
        %v546 = vadd.f32 0.0, %v545
        %547 = vmatprep.mubr.f32.mxu0 0.0
        %548 = vmatmul.mubr.f32.gmra.mrb[0].mxu0 %v274
        %v549 = vpop.f32.mrb[0].mxu0
        %v550 = vadd.f32 0.0, %v549
        %v551 = vpop.f32.mrb[0].mxu0
        %v552 = vadd.f32 0.0, %v551
        %553 = vmatprep.mubr.f32.mxu0 0.0
        %554 = vmatmul.mubr.f32.gmra.mrb[0].mxu0 %v275
        %v555 = vpop.f32.mrb[0].mxu0
        %v556 = vadd.f32 0.0, %v555
        %v557 = vpop.f32.mrb[0].mxu0
        %v558 = vadd.f32 0.0, %v557
        %559 = vmatprep.mubr.f32.mxu0 0.0
        %560 = vmatmul.mubr.f32.gmra.mrb[0].mxu0 %v276
        %v561 = vpop.f32.mrb[0].mxu0
        %v562 = vadd.f32 0.0, %v561
        %v563 = vpop.f32.mrb[0].mxu0
        %v564 = vadd.f32 0.0, %v563
        %565 = vdwg.mxu0
        %v566 = vmul.f32 %v376, %v376
        %v567 = vmul.f32 %v378, %v378
        %v568 = vmul.f32 %v382, %v382
        %v569 = vmul.f32 %v384, %v384
        %v570 = vmul.f32 %v388, %v388
        %v571 = vmul.f32 %v390, %v390
        %v572 = vmul.f32 %v394, %v394
        %v573 = vmul.f32 %v396, %v396
        %v574 = vmul.f32 %v400, %v400
        %v575 = vmul.f32 %v402, %v402
        %v576 = vmul.f32 %v406, %v406
        %v577 = vmul.f32 %v408, %v408
        %v578 = vmul.f32 %v412, %v412
        %v579 = vmul.f32 %v414, %v414
        %v580 = vmul.f32 %v418, %v418
        %v581 = vmul.f32 %v420, %v420
        %v582 = vmul.f32 %v424, %v424
        %v583 = vmul.f32 %v426, %v426
        %v584 = vmul.f32 %v430, %v430
        %v585 = vmul.f32 %v432, %v432
        %v586 = vmul.f32 %v436, %v436
        %v587 = vmul.f32 %v438, %v438
        %v588 = vmul.f32 %v442, %v442
        %v589 = vmul.f32 %v444, %v444
        %v590 = vmul.f32 %v448, %v448
        %v591 = vmul.f32 %v450, %v450
        %v592 = vmul.f32 %v454, %v454
        %v593 = vmul.f32 %v456, %v456
        %v594 = vmul.f32 %v460, %v460
        %v595 = vmul.f32 %v462, %v462
        %v596 = vmul.f32 %v466, %v466
        %v597 = vmul.f32 %v468, %v468
        %v598 = vmul.f32 %v472, %v472
        %v599 = vmul.f32 %v474, %v474
        %v600 = vmul.f32 %v478, %v478
        %v601 = vmul.f32 %v480, %v480
        %v602 = vmul.f32 %v484, %v484
        %v603 = vmul.f32 %v486, %v486
        %v604 = vmul.f32 %v490, %v490
        %v605 = vmul.f32 %v492, %v492
        %v606 = vmul.f32 %v496, %v496
        %v607 = vmul.f32 %v498, %v498
        %v608 = vmul.f32 %v502, %v502
        %v609 = vmul.f32 %v504, %v504
        %v610 = vmul.f32 %v508, %v508
        %v611 = vmul.f32 %v510, %v510
        %v612 = vmul.f32 %v514, %v514
        %v613 = vmul.f32 %v516, %v516
        %v614 = vmul.f32 %v520, %v520
        %v615 = vmul.f32 %v522, %v522
        %v616 = vmul.f32 %v526, %v526
        %v617 = vmul.f32 %v528, %v528
        %v618 = vmul.f32 %v532, %v532
        %v619 = vmul.f32 %v534, %v534
        %v620 = vmul.f32 %v538, %v538
        %v621 = vmul.f32 %v540, %v540
        %v622 = vmul.f32 %v544, %v544
        %v623 = vmul.f32 %v546, %v546
        %v624 = vmul.f32 %v550, %v550
        %v625 = vmul.f32 %v552, %v552
        %v626 = vmul.f32 %v556, %v556
        %v627 = vmul.f32 %v558, %v558
        %v628 = vmul.f32 %v562, %v562
        %v629 = vmul.f32 %v564, %v564
        %v630 = vld [vmem:[%s2] sm:$0xff]
        %v631 = vld [vmem:[%s2 + $0x8] sm:$0xff]
        %v632 = vld [vmem:[%s2 + $0x10] sm:$0xff]
        %v633 = vld [vmem:[%s2 + $0x18] sm:$0xff]
        %v634 = vld [vmem:[%s2 + $0x20] sm:$0xff]
        %v635 = vld [vmem:[%s2 + $0x28] sm:$0xff]
        %v636 = vld [vmem:[%s2 + $0x30] sm:$0xff]
        %v637 = vld [vmem:[%s2 + $0x38] sm:$0xff]
        %v638 = vld [vmem:[%s2 + $0x40] sm:$0xff]
        %v639 = vld [vmem:[%s2 + $0x48] sm:$0xff]
        %v640 = vld [vmem:[%s2 + $0x50] sm:$0xff]
        %v641 = vld [vmem:[%s2 + $0x58] sm:$0xff]
        %v642 = vld [vmem:[%s2 + $0x60] sm:$0xff]
        %v643 = vld [vmem:[%s2 + $0x68] sm:$0xff]
        %v644 = vld [vmem:[%s2 + $0x70] sm:$0xff]
        %v645 = vld [vmem:[%s2 + $0x78] sm:$0xff]
        %v646 = vld [vmem:[%s2 + $0x80] sm:$0xff]
        %v647 = vld [vmem:[%s2 + $0x88] sm:$0xff]
        %v648 = vld [vmem:[%s2 + $0x90] sm:$0xff]
        %v649 = vld [vmem:[%s2 + $0x98] sm:$0xff]
        %v650 = vld [vmem:[%s2 + $0xa0] sm:$0xff]
        %v651 = vld [vmem:[%s2 + $0xa8] sm:$0xff]
        %v652 = vld [vmem:[%s2 + $0xb0] sm:$0xff]
        %v653 = vld [vmem:[%s2 + $0xb8] sm:$0xff]
        %v654 = vld [vmem:[%s2 + $0xc0] sm:$0xff]
        %v655 = vld [vmem:[%s2 + $0xc8] sm:$0xff]
        %v656 = vld [vmem:[%s2 + $0xd0] sm:$0xff]
        %v657 = vld [vmem:[%s2 + $0xd8] sm:$0xff]
        %v658 = vld [vmem:[%s2 + $0xe0] sm:$0xff]
        %v659 = vld [vmem:[%s2 + $0xe8] sm:$0xff]
        %v660 = vld [vmem:[%s2 + $0xf0] sm:$0xff]
        %v661 = vld [vmem:[%s2 + $0xf8] sm:$0xff]
        %662 = vmatprep.subr.mxu0 0.0
        %663 = vmatpush1.msra.mxu0 %v630
        %664 = vmatprep.subr.mxu0 0.0
        %665 = vmatpush1.msra.mxu0 %v631
        %666 = vmatprep.subr.mxu0 0.0
        %667 = vmatpush1.msra.mxu0 %v632
        %668 = vmatprep.subr.mxu0 0.0
        %669 = vmatpush1.msra.mxu0 %v633
        %670 = vmatprep.subr.mxu0 0.0
        %671 = vmatpush1.msra.mxu0 %v634
        %672 = vmatprep.subr.mxu0 0.0
        %673 = vmatpush1.msra.mxu0 %v635
        %674 = vmatprep.subr.mxu0 0.0
        %675 = vmatpush1.msra.mxu0 %v636
        %676 = vmatprep.subr.mxu0 0.0
        %677 = vmatpush1.msra.mxu0 %v637
        %678 = vmatprep.subr.mxu0 0.0
        %679 = vmatpush1.msra.mxu0 %v638
        %680 = vmatprep.subr.mxu0 0.0
        %681 = vmatpush1.msra.mxu0 %v639
        %682 = vmatprep.subr.mxu0 0.0
        %683 = vmatpush1.msra.mxu0 %v640
        %684 = vmatprep.subr.mxu0 0.0
        %685 = vmatpush1.msra.mxu0 %v641
        %686 = vmatprep.subr.mxu0 0.0
        %687 = vmatpush1.msra.mxu0 %v642
        %688 = vmatprep.subr.mxu0 0.0
        %689 = vmatpush1.msra.mxu0 %v643
        %690 = vmatprep.subr.mxu0 0.0
        %691 = vmatpush1.msra.mxu0 %v644
        %692 = vmatprep.subr.mxu0 0.0
        %693 = vmatpush1.msra.mxu0 %v645
        %694 = vmatprep.subr.mxu0 0.0
        %695 = vmatpush1.msra.mxu0 %v646
        %696 = vmatprep.subr.mxu0 0.0
        %697 = vmatpush1.msra.mxu0 %v647
        %698 = vmatprep.subr.mxu0 0.0
        %699 = vmatpush1.msra.mxu0 %v648
        %700 = vmatprep.subr.mxu0 0.0
        %701 = vmatpush1.msra.mxu0 %v649
        %702 = vmatprep.subr.mxu0 0.0
        %703 = vmatpush1.msra.mxu0 %v650
        %704 = vmatprep.subr.mxu0 0.0
        %705 = vmatpush1.msra.mxu0 %v651
        %706 = vmatprep.subr.mxu0 0.0
        %707 = vmatpush1.msra.mxu0 %v652
        %708 = vmatprep.subr.mxu0 0.0
        %709 = vmatpush1.msra.mxu0 %v653
        %710 = vmatprep.subr.mxu0 0.0
        %711 = vmatpush1.msra.mxu0 %v654
        %712 = vmatprep.subr.mxu0 0.0
        %713 = vmatpush1.msra.mxu0 %v655
        %714 = vmatprep.subr.mxu0 0.0
        %715 = vmatpush1.msra.mxu0 %v656
        %716 = vmatprep.subr.mxu0 0.0
        %717 = vmatpush1.msra.mxu0 %v657
        %718 = vmatprep.subr.mxu0 0.0
        %719 = vmatpush1.msra.mxu0 %v658
        %720 = vmatprep.subr.mxu0 0.0
        %721 = vmatpush1.msra.mxu0 %v659
        %722 = vmatprep.subr.mxu0 0.0
        %723 = vmatpush1.msra.mxu0 %v660
        %724 = vmatprep.subr.mxu0 0.0
        %725 = vmatpush1.msra.mxu0 %v661
        %726 = vmatprep.mubr.f32.mxu0 %v567
        %727 = vmatmul.mubr.f32.gmra.mrb[0].mxu0 %v566
        %v728 = vpop.f32.mrb[0].mxu0
        %v729 = vadd.f32 1e-05, %v728
        %v730 = vpop.f32.mrb[0].mxu0
        %731 = vmatprep.mubr.f32.mxu0 %v569
        %732 = vmatmul.mubr.f32.gmra.mrb[0].mxu0 %v568
        %v733 = vpop.f32.mrb[0].mxu0
        %v734 = vadd.f32 1e-05, %v733
        %v735 = vpop.f32.mrb[0].mxu0
        %736 = vmatprep.mubr.f32.mxu0 %v571
        %737 = vmatmul.mubr.f32.gmra.mrb[0].mxu0 %v570
        %v738 = vpop.f32.mrb[0].mxu0
        %v739 = vadd.f32 1e-05, %v738
        %v740 = vpop.f32.mrb[0].mxu0
        %741 = vmatprep.mubr.f32.mxu0 %v573
        %742 = vmatmul.mubr.f32.gmra.mrb[0].mxu0 %v572
        %v743 = vpop.f32.mrb[0].mxu0
        %v744 = vadd.f32 1e-05, %v743
        %v745 = vpop.f32.mrb[0].mxu0
        %746 = vmatprep.mubr.f32.mxu0 %v575
        %747 = vmatmul.mubr.f32.gmra.mrb[0].mxu0 %v574
        %v748 = vpop.f32.mrb[0].mxu0
        %v749 = vadd.f32 1e-05, %v748
        %v750 = vpop.f32.mrb[0].mxu0
        %751 = vmatprep.mubr.f32.mxu0 %v577
        %752 = vmatmul.mubr.f32.gmra.mrb[0].mxu0 %v576
        %v753 = vpop.f32.mrb[0].mxu0
        %v754 = vadd.f32 1e-05, %v753
        %v755 = vpop.f32.mrb[0].mxu0
        %756 = vmatprep.mubr.f32.mxu0 %v579
        %757 = vmatmul.mubr.f32.gmra.mrb[0].mxu0 %v578
        %v758 = vpop.f32.mrb[0].mxu0
        %v759 = vadd.f32 1e-05, %v758
        %v760 = vpop.f32.mrb[0].mxu0
        %761 = vmatprep.mubr.f32.mxu0 %v581
        %762 = vmatmul.mubr.f32.gmra.mrb[0].mxu0 %v580
        %v763 = vpop.f32.mrb[0].mxu0
        %v764 = vadd.f32 1e-05, %v763
        %v765 = vpop.f32.mrb[0].mxu0
        %766 = vmatprep.mubr.f32.mxu0 %v583
        %767 = vmatmul.mubr.f32.gmra.mrb[0].mxu0 %v582
        %v768 = vpop.f32.mrb[0].mxu0
        %v769 = vadd.f32 1e-05, %v768
        %v770 = vpop.f32.mrb[0].mxu0
        %771 = vmatprep.mubr.f32.mxu0 %v585
        %772 = vmatmul.mubr.f32.gmra.mrb[0].mxu0 %v584
        %v773 = vpop.f32.mrb[0].mxu0
        %v774 = vadd.f32 1e-05, %v773
        %v775 = vpop.f32.mrb[0].mxu0
        %776 = vmatprep.mubr.f32.mxu0 %v587
        %777 = vmatmul.mubr.f32.gmra.mrb[0].mxu0 %v586
        %v778 = vpop.f32.mrb[0].mxu0
        %v779 = vadd.f32 1e-05, %v778
        %v780 = vpop.f32.mrb[0].mxu0
        %781 = vmatprep.mubr.f32.mxu0 %v589
        %782 = vmatmul.mubr.f32.gmra.mrb[0].mxu0 %v588
        %v783 = vpop.f32.mrb[0].mxu0
        %v784 = vadd.f32 1e-05, %v783
        %v785 = vpop.f32.mrb[0].mxu0
        %786 = vmatprep.mubr.f32.mxu0 %v591
        %787 = vmatmul.mubr.f32.gmra.mrb[0].mxu0 %v590
        %v788 = vpop.f32.mrb[0].mxu0
        %v789 = vadd.f32 1e-05, %v788
        %v790 = vpop.f32.mrb[0].mxu0
        %791 = vmatprep.mubr.f32.mxu0 %v593
        %792 = vmatmul.mubr.f32.gmra.mrb[0].mxu0 %v592
        %v793 = vpop.f32.mrb[0].mxu0
        %v794 = vadd.f32 1e-05, %v793
        %v795 = vpop.f32.mrb[0].mxu0
        %796 = vmatprep.mubr.f32.mxu0 %v595
        %797 = vmatmul.mubr.f32.gmra.mrb[0].mxu0 %v594
        %v798 = vpop.f32.mrb[0].mxu0
        %v799 = vadd.f32 1e-05, %v798
        %v800 = vpop.f32.mrb[0].mxu0
        %801 = vmatprep.mubr.f32.mxu0 %v597
        %802 = vmatmul.mubr.f32.gmra.mrb[0].mxu0 %v596
        %v803 = vpop.f32.mrb[0].mxu0
        %v804 = vadd.f32 1e-05, %v803
        %v805 = vpop.f32.mrb[0].mxu0
        %806 = vmatprep.mubr.f32.mxu0 %v599
        %807 = vmatmul.mubr.f32.gmra.mrb[0].mxu0 %v598
        %v808 = vpop.f32.mrb[0].mxu0
        %v809 = vadd.f32 1e-05, %v808
        %v810 = vpop.f32.mrb[0].mxu0
        %811 = vmatprep.mubr.f32.mxu0 %v601
        %812 = vmatmul.mubr.f32.gmra.mrb[0].mxu0 %v600
        %v813 = vpop.f32.mrb[0].mxu0
        %v814 = vadd.f32 1e-05, %v813
        %v815 = vpop.f32.mrb[0].mxu0
        %816 = vmatprep.mubr.f32.mxu0 %v603
        %817 = vmatmul.mubr.f32.gmra.mrb[0].mxu0 %v602
        %v818 = vpop.f32.mrb[0].mxu0
        %v819 = vadd.f32 1e-05, %v818
        %v820 = vpop.f32.mrb[0].mxu0
        %821 = vmatprep.mubr.f32.mxu0 %v605
        %822 = vmatmul.mubr.f32.gmra.mrb[0].mxu0 %v604
        %v823 = vpop.f32.mrb[0].mxu0
        %v824 = vadd.f32 1e-05, %v823
        %v825 = vpop.f32.mrb[0].mxu0
        %826 = vmatprep.mubr.f32.mxu0 %v607
        %827 = vmatmul.mubr.f32.gmra.mrb[0].mxu0 %v606
        %v828 = vpop.f32.mrb[0].mxu0
        %v829 = vadd.f32 1e-05, %v828
        %v830 = vpop.f32.mrb[0].mxu0
        %831 = vmatprep.mubr.f32.mxu0 %v609
        %832 = vmatmul.mubr.f32.gmra.mrb[0].mxu0 %v608
        %v833 = vpop.f32.mrb[0].mxu0
        %v834 = vadd.f32 1e-05, %v833
        %v835 = vpop.f32.mrb[0].mxu0
        %836 = vmatprep.mubr.f32.mxu0 %v611
        %837 = vmatmul.mubr.f32.gmra.mrb[0].mxu0 %v610
        %v838 = vpop.f32.mrb[0].mxu0
        %v839 = vadd.f32 1e-05, %v838
        %v840 = vpop.f32.mrb[0].mxu0
        %841 = vmatprep.mubr.f32.mxu0 %v613
        %842 = vmatmul.mubr.f32.gmra.mrb[0].mxu0 %v612
        %v843 = vpop.f32.mrb[0].mxu0
        %v844 = vadd.f32 1e-05, %v843
        %v845 = vpop.f32.mrb[0].mxu0
        %846 = vmatprep.mubr.f32.mxu0 %v615
        %847 = vmatmul.mubr.f32.gmra.mrb[0].mxu0 %v614
        %v848 = vpop.f32.mrb[0].mxu0
        %v849 = vadd.f32 1e-05, %v848
        %v850 = vpop.f32.mrb[0].mxu0
        %851 = vmatprep.mubr.f32.mxu0 %v617
        %852 = vmatmul.mubr.f32.gmra.mrb[0].mxu0 %v616
        %v853 = vpop.f32.mrb[0].mxu0
        %v854 = vadd.f32 1e-05, %v853
        %v855 = vpop.f32.mrb[0].mxu0
        %856 = vmatprep.mubr.f32.mxu0 %v619
        %857 = vmatmul.mubr.f32.gmra.mrb[0].mxu0 %v618
        %v858 = vpop.f32.mrb[0].mxu0
        %v859 = vadd.f32 1e-05, %v858
        %v860 = vpop.f32.mrb[0].mxu0
        %861 = vmatprep.mubr.f32.mxu0 %v621
        %862 = vmatmul.mubr.f32.gmra.mrb[0].mxu0 %v620
        %v863 = vpop.f32.mrb[0].mxu0
        %v864 = vadd.f32 1e-05, %v863
        %v865 = vpop.f32.mrb[0].mxu0
        %866 = vmatprep.mubr.f32.mxu0 %v623
        %867 = vmatmul.mubr.f32.gmra.mrb[0].mxu0 %v622
        %v868 = vpop.f32.mrb[0].mxu0
        %v869 = vadd.f32 1e-05, %v868
        %v870 = vpop.f32.mrb[0].mxu0
        %871 = vmatprep.mubr.f32.mxu0 %v625
        %872 = vmatmul.mubr.f32.gmra.mrb[0].mxu0 %v624
        %v873 = vpop.f32.mrb[0].mxu0
        %v874 = vadd.f32 1e-05, %v873
        %v875 = vpop.f32.mrb[0].mxu0
        %876 = vmatprep.mubr.f32.mxu0 %v627
        %877 = vmatmul.mubr.f32.gmra.mrb[0].mxu0 %v626
        %v878 = vpop.f32.mrb[0].mxu0
        %v879 = vadd.f32 1e-05, %v878
        %v880 = vpop.f32.mrb[0].mxu0
        %881 = vmatprep.mubr.f32.mxu0 %v629
        %882 = vmatmul.mubr.f32.gmra.mrb[0].mxu0 %v628
        %v883 = vpop.f32.mrb[0].mxu0
        %v884 = vadd.f32 1e-05, %v883
        %v885 = vpop.f32.mrb[0].mxu0
        %886 = vdwg.mxu0
        %v887 = vrsqrt.pop %v729
        %v888 = vrsqrt.pop %v734
        %v889 = vrsqrt.pop %v739
        %v890 = vrsqrt.pop %v744
        %v891 = vrsqrt.pop %v749
        %v892 = vrsqrt.pop %v754
        %v893 = vrsqrt.pop %v759
        %v894 = vrsqrt.pop %v764
        %v895 = vrsqrt.pop %v769
        %v896 = vrsqrt.pop %v774
        %v897 = vrsqrt.pop %v779
        %v898 = vrsqrt.pop %v784
        %v899 = vrsqrt.pop %v789
        %v900 = vrsqrt.pop %v794
        %v901 = vrsqrt.pop %v799
        %v902 = vrsqrt.pop %v804
        %v903 = vrsqrt.pop %v809
        %v904 = vrsqrt.pop %v814
        %v905 = vrsqrt.pop %v819
        %v906 = vrsqrt.pop %v824
        %v907 = vrsqrt.pop %v829
        %v908 = vrsqrt.pop %v834
        %v909 = vrsqrt.pop %v839
        %v910 = vrsqrt.pop %v844
        %v911 = vrsqrt.pop %v849
        %v912 = vrsqrt.pop %v854
        %v913 = vrsqrt.pop %v859
        %v914 = vrsqrt.pop %v864
        %v915 = vrsqrt.pop %v869
        %v916 = vrsqrt.pop %v874
        %v917 = vrsqrt.pop %v879
        %v918 = vrsqrt.pop %v884
        %v919 = vld [vmem:[%s3] sm:$0xff]
        %v920 = vld [vmem:[%s3 + $0x8] sm:$0xff]
        %v921 = vld [vmem:[%s3 + $0x10] sm:$0xff]
        %v922 = vld [vmem:[%s3 + $0x18] sm:$0xff]
        %vm923 = vcmask 130048
        %v925 = vsel %vm923, %v887, 0
        %v928 = vsel %vm923, %v888, 0
        %v931 = vsel %vm923, %v889, 0
        %v934 = vsel %vm923, %v890, 0
        %v937 = vsel %vm923, %v891, 0
        %v940 = vsel %vm923, %v892, 0
        %v943 = vsel %vm923, %v893, 0
        %v946 = vsel %vm923, %v894, 0
        %v949 = vsel %vm923, %v895, 0
        %v952 = vsel %vm923, %v896, 0
        %v955 = vsel %vm923, %v897, 0
        %v958 = vsel %vm923, %v898, 0
        %v961 = vsel %vm923, %v899, 0
        %v964 = vsel %vm923, %v900, 0
        %v967 = vsel %vm923, %v901, 0
        %v970 = vsel %vm923, %v902, 0
        %v973 = vsel %vm923, %v903, 0
        %v976 = vsel %vm923, %v904, 0
        %v979 = vsel %vm923, %v905, 0
        %v982 = vsel %vm923, %v906, 0
        %v985 = vsel %vm923, %v907, 0
        %v988 = vsel %vm923, %v908, 0
        %v991 = vsel %vm923, %v909, 0
        %v994 = vsel %vm923, %v910, 0
        %v997 = vsel %vm923, %v911, 0
        %v1000 = vsel %vm923, %v912, 0
        %v1003 = vsel %vm923, %v913, 0
        %v1006 = vsel %vm923, %v914, 0
        %v1009 = vsel %vm923, %v915, 0
        %v1012 = vsel %vm923, %v916, 0
        %v1015 = vsel %vm923, %v917, 0
        %v1018 = vsel %vm923, %v918, 0
        %1020 = vmatprep.subr.mxu0 %v920
        %1021 = vmatpush1.msra.mxu0 %v919
        %1022 = vmatprep.subr.mxu0 %v922
        %1023 = vmatpush1.msra.mxu0 %v921
        %1024 = vmatprep.subr.mxu0 0.0
        %1025 = vmatpush1.msra.mxu0 0.0
        %1026 = vmatprep.subr.mxu0 0.0
        %1027 = vmatpush1.msra.mxu0 0.0
        %1028 = vmatprep.subr.mxu0 0.0
        %1029 = vmatpush1.msra.mxu0 0.0
        %1030 = vmatprep.subr.mxu0 0.0
        %1031 = vmatpush1.msra.mxu0 0.0
        %1032 = vmatprep.subr.mxu0 0.0
        %1033 = vmatpush1.msra.mxu0 0.0
        %1034 = vmatprep.subr.mxu0 0.0
        %1035 = vmatpush1.msra.mxu0 0.0
        %1036 = vmatprep.subr.mxu0 0.0
        %1037 = vmatpush1.msra.mxu0 0.0
        %1038 = vmatprep.subr.mxu0 0.0
        %1039 = vmatpush1.msra.mxu0 0.0
        %1040 = vmatprep.subr.mxu0 0.0
        %1041 = vmatpush1.msra.mxu0 0.0
        %1042 = vmatprep.subr.mxu0 0.0
        %1043 = vmatpush1.msra.mxu0 0.0
        %1044 = vmatprep.subr.mxu0 0.0
        %1045 = vmatpush1.msra.mxu0 0.0
        %1046 = vmatprep.subr.mxu0 0.0
        %1047 = vmatpush1.msra.mxu0 0.0
        %1048 = vmatprep.subr.mxu0 0.0
        %1049 = vmatpush1.msra.mxu0 0.0
        %1050 = vmatprep.subr.mxu0 0.0
        %1051 = vmatpush1.msra.mxu0 0.0
        %1052 = vmatprep.subr.mxu0 0.0
        %1053 = vmatpush1.msra.mxu0 0.0
        %1054 = vmatprep.subr.mxu0 0.0
        %1055 = vmatpush1.msra.mxu0 0.0
        %1056 = vmatprep.subr.mxu0 0.0
        %1057 = vmatpush1.msra.mxu0 0.0
        %1058 = vmatprep.subr.mxu0 0.0
        %1059 = vmatpush1.msra.mxu0 0.0
        %1060 = vmatprep.subr.mxu0 0.0
        %1061 = vmatpush1.msra.mxu0 0.0
        %1062 = vmatprep.subr.mxu0 0.0
        %1063 = vmatpush1.msra.mxu0 0.0
        %1064 = vmatprep.subr.mxu0 0.0
        %1065 = vmatpush1.msra.mxu0 0.0
        %1066 = vmatprep.subr.mxu0 0.0
        %1067 = vmatpush1.msra.mxu0 0.0
        %1068 = vmatprep.subr.mxu0 0.0
        %1069 = vmatpush1.msra.mxu0 0.0
        %1070 = vmatprep.subr.mxu0 0.0
        %1071 = vmatpush1.msra.mxu0 0.0
        %1072 = vmatprep.subr.mxu0 0.0
        %1073 = vmatpush1.msra.mxu0 0.0
        %1074 = vmatprep.subr.mxu0 0.0
        %1075 = vmatpush1.msra.mxu0 0.0
        %1076 = vmatprep.subr.mxu0 0.0
        %1077 = vmatpush1.msra.mxu0 0.0
        %1078 = vmatprep.subr.mxu0 0.0
        %1079 = vmatpush1.msra.mxu0 0.0
        %1080 = vmatprep.subr.mxu0 0.0
        %1081 = vmatpush1.msra.mxu0 0.0
        %1082 = vmatprep.subr.mxu0 0.0
        %1083 = vmatpush1.msra.mxu0 0.0
        %1084 = vmatprep.mubr.f32.mxu0 0.0
        %1085 = vmatmul.mubr.f32.gmra.mrb[0].mxu0 %v925
        %v1086 = vpop.f32.mrb[0].mxu0
        %v1087 = vadd.f32 0.0, %v1086
        %v1088 = vpop.f32.mrb[0].mxu0
        %v1089 = vadd.f32 0.0, %v1088
        %1090 = vmatprep.mubr.f32.mxu0 0.0
        %1091 = vmatmul.mubr.f32.gmra.mrb[0].mxu0 %v928
        %v1092 = vpop.f32.mrb[0].mxu0
        %v1093 = vadd.f32 0.0, %v1092
        %v1094 = vpop.f32.mrb[0].mxu0
        %v1095 = vadd.f32 0.0, %v1094
        %1096 = vmatprep.mubr.f32.mxu0 0.0
        %1097 = vmatmul.mubr.f32.gmra.mrb[0].mxu0 %v931
        %v1098 = vpop.f32.mrb[0].mxu0
        %v1099 = vadd.f32 0.0, %v1098
        %v1100 = vpop.f32.mrb[0].mxu0
        %v1101 = vadd.f32 0.0, %v1100
        %1102 = vmatprep.mubr.f32.mxu0 0.0
        %1103 = vmatmul.mubr.f32.gmra.mrb[0].mxu0 %v934
        %v1104 = vpop.f32.mrb[0].mxu0
        %v1105 = vadd.f32 0.0, %v1104
        %v1106 = vpop.f32.mrb[0].mxu0
        %v1107 = vadd.f32 0.0, %v1106
        %1108 = vmatprep.mubr.f32.mxu0 0.0
        %1109 = vmatmul.mubr.f32.gmra.mrb[0].mxu0 %v937
        %v1110 = vpop.f32.mrb[0].mxu0
        %v1111 = vadd.f32 0.0, %v1110
        %v1112 = vpop.f32.mrb[0].mxu0
        %v1113 = vadd.f32 0.0, %v1112
        %1114 = vmatprep.mubr.f32.mxu0 0.0
        %1115 = vmatmul.mubr.f32.gmra.mrb[0].mxu0 %v940
        %v1116 = vpop.f32.mrb[0].mxu0
        %v1117 = vadd.f32 0.0, %v1116
        %v1118 = vpop.f32.mrb[0].mxu0
        %v1119 = vadd.f32 0.0, %v1118
        %1120 = vmatprep.mubr.f32.mxu0 0.0
        %1121 = vmatmul.mubr.f32.gmra.mrb[0].mxu0 %v943
        %v1122 = vpop.f32.mrb[0].mxu0
        %v1123 = vadd.f32 0.0, %v1122
        %v1124 = vpop.f32.mrb[0].mxu0
        %v1125 = vadd.f32 0.0, %v1124
        %1126 = vmatprep.mubr.f32.mxu0 0.0
        %1127 = vmatmul.mubr.f32.gmra.mrb[0].mxu0 %v946
        %v1128 = vpop.f32.mrb[0].mxu0
        %v1129 = vadd.f32 0.0, %v1128
        %v1130 = vpop.f32.mrb[0].mxu0
        %v1131 = vadd.f32 0.0, %v1130
        %1132 = vmatprep.mubr.f32.mxu0 0.0
        %1133 = vmatmul.mubr.f32.gmra.mrb[0].mxu0 %v949
        %v1134 = vpop.f32.mrb[0].mxu0
        %v1135 = vadd.f32 0.0, %v1134
        %v1136 = vpop.f32.mrb[0].mxu0
        %v1137 = vadd.f32 0.0, %v1136
        %1138 = vmatprep.mubr.f32.mxu0 0.0
        %1139 = vmatmul.mubr.f32.gmra.mrb[0].mxu0 %v952
        %v1140 = vpop.f32.mrb[0].mxu0
        %v1141 = vadd.f32 0.0, %v1140
        %v1142 = vpop.f32.mrb[0].mxu0
        %v1143 = vadd.f32 0.0, %v1142
        %1144 = vmatprep.mubr.f32.mxu0 0.0
        %1145 = vmatmul.mubr.f32.gmra.mrb[0].mxu0 %v955
        %v1146 = vpop.f32.mrb[0].mxu0
        %v1147 = vadd.f32 0.0, %v1146
        %v1148 = vpop.f32.mrb[0].mxu0
        %v1149 = vadd.f32 0.0, %v1148
        %1150 = vmatprep.mubr.f32.mxu0 0.0
        %1151 = vmatmul.mubr.f32.gmra.mrb[0].mxu0 %v958
        %v1152 = vpop.f32.mrb[0].mxu0
        %v1153 = vadd.f32 0.0, %v1152
        %v1154 = vpop.f32.mrb[0].mxu0
        %v1155 = vadd.f32 0.0, %v1154
        %1156 = vmatprep.mubr.f32.mxu0 0.0
        %1157 = vmatmul.mubr.f32.gmra.mrb[0].mxu0 %v961
        %v1158 = vpop.f32.mrb[0].mxu0
        %v1159 = vadd.f32 0.0, %v1158
        %v1160 = vpop.f32.mrb[0].mxu0
        %v1161 = vadd.f32 0.0, %v1160
        %1162 = vmatprep.mubr.f32.mxu0 0.0
        %1163 = vmatmul.mubr.f32.gmra.mrb[0].mxu0 %v964
        %v1164 = vpop.f32.mrb[0].mxu0
        %v1165 = vadd.f32 0.0, %v1164
        %v1166 = vpop.f32.mrb[0].mxu0
        %v1167 = vadd.f32 0.0, %v1166
        %1168 = vmatprep.mubr.f32.mxu0 0.0
        %1169 = vmatmul.mubr.f32.gmra.mrb[0].mxu0 %v967
        %v1170 = vpop.f32.mrb[0].mxu0
        %v1171 = vadd.f32 0.0, %v1170
        %v1172 = vpop.f32.mrb[0].mxu0
        %v1173 = vadd.f32 0.0, %v1172
        %1174 = vmatprep.mubr.f32.mxu0 0.0
        %1175 = vmatmul.mubr.f32.gmra.mrb[0].mxu0 %v970
        %v1176 = vpop.f32.mrb[0].mxu0
        %v1177 = vadd.f32 0.0, %v1176
        %v1178 = vpop.f32.mrb[0].mxu0
        %v1179 = vadd.f32 0.0, %v1178
        %1180 = vmatprep.mubr.f32.mxu0 0.0
        %1181 = vmatmul.mubr.f32.gmra.mrb[0].mxu0 %v973
        %v1182 = vpop.f32.mrb[0].mxu0
        %v1183 = vadd.f32 0.0, %v1182
        %v1184 = vpop.f32.mrb[0].mxu0
        %v1185 = vadd.f32 0.0, %v1184
        %1186 = vmatprep.mubr.f32.mxu0 0.0
        %1187 = vmatmul.mubr.f32.gmra.mrb[0].mxu0 %v976
        %v1188 = vpop.f32.mrb[0].mxu0
        %v1189 = vadd.f32 0.0, %v1188
        %v1190 = vpop.f32.mrb[0].mxu0
        %v1191 = vadd.f32 0.0, %v1190
        %1192 = vmatprep.mubr.f32.mxu0 0.0
        %1193 = vmatmul.mubr.f32.gmra.mrb[0].mxu0 %v979
        %v1194 = vpop.f32.mrb[0].mxu0
        %v1195 = vadd.f32 0.0, %v1194
        %v1196 = vpop.f32.mrb[0].mxu0
        %v1197 = vadd.f32 0.0, %v1196
        %1198 = vmatprep.mubr.f32.mxu0 0.0
        %1199 = vmatmul.mubr.f32.gmra.mrb[0].mxu0 %v982
        %v1200 = vpop.f32.mrb[0].mxu0
        %v1201 = vadd.f32 0.0, %v1200
        %v1202 = vpop.f32.mrb[0].mxu0
        %v1203 = vadd.f32 0.0, %v1202
        %1204 = vmatprep.mubr.f32.mxu0 0.0
        %1205 = vmatmul.mubr.f32.gmra.mrb[0].mxu0 %v985
        %v1206 = vpop.f32.mrb[0].mxu0
        %v1207 = vadd.f32 0.0, %v1206
        %v1208 = vpop.f32.mrb[0].mxu0
        %v1209 = vadd.f32 0.0, %v1208
        %1210 = vmatprep.mubr.f32.mxu0 0.0
        %1211 = vmatmul.mubr.f32.gmra.mrb[0].mxu0 %v988
        %v1212 = vpop.f32.mrb[0].mxu0
        %v1213 = vadd.f32 0.0, %v1212
        %v1214 = vpop.f32.mrb[0].mxu0
        %v1215 = vadd.f32 0.0, %v1214
        %1216 = vmatprep.mubr.f32.mxu0 0.0
        %1217 = vmatmul.mubr.f32.gmra.mrb[0].mxu0 %v991
        %v1218 = vpop.f32.mrb[0].mxu0
        %v1219 = vadd.f32 0.0, %v1218
        %v1220 = vpop.f32.mrb[0].mxu0
        %v1221 = vadd.f32 0.0, %v1220
        %1222 = vmatprep.mubr.f32.mxu0 0.0
        %1223 = vmatmul.mubr.f32.gmra.mrb[0].mxu0 %v994
        %v1224 = vpop.f32.mrb[0].mxu0
        %v1225 = vadd.f32 0.0, %v1224
        %v1226 = vpop.f32.mrb[0].mxu0
        %v1227 = vadd.f32 0.0, %v1226
        %1228 = vmatprep.mubr.f32.mxu0 0.0
        %1229 = vmatmul.mubr.f32.gmra.mrb[0].mxu0 %v997
        %v1230 = vpop.f32.mrb[0].mxu0
        %v1231 = vadd.f32 0.0, %v1230
        %v1232 = vpop.f32.mrb[0].mxu0
        %v1233 = vadd.f32 0.0, %v1232
        %1234 = vmatprep.mubr.f32.mxu0 0.0
        %1235 = vmatmul.mubr.f32.gmra.mrb[0].mxu0 %v1000
        %v1236 = vpop.f32.mrb[0].mxu0
        %v1237 = vadd.f32 0.0, %v1236
        %v1238 = vpop.f32.mrb[0].mxu0
        %v1239 = vadd.f32 0.0, %v1238
        %1240 = vmatprep.mubr.f32.mxu0 0.0
        %1241 = vmatmul.mubr.f32.gmra.mrb[0].mxu0 %v1003
        %v1242 = vpop.f32.mrb[0].mxu0
        %v1243 = vadd.f32 0.0, %v1242
        %v1244 = vpop.f32.mrb[0].mxu0
        %v1245 = vadd.f32 0.0, %v1244
        %1246 = vmatprep.mubr.f32.mxu0 0.0
        %1247 = vmatmul.mubr.f32.gmra.mrb[0].mxu0 %v1006
        %v1248 = vpop.f32.mrb[0].mxu0
        %v1249 = vadd.f32 0.0, %v1248
        %v1250 = vpop.f32.mrb[0].mxu0
        %v1251 = vadd.f32 0.0, %v1250
        %1252 = vmatprep.mubr.f32.mxu0 0.0
        %1253 = vmatmul.mubr.f32.gmra.mrb[0].mxu0 %v1009
        %v1254 = vpop.f32.mrb[0].mxu0
        %v1255 = vadd.f32 0.0, %v1254
        %v1256 = vpop.f32.mrb[0].mxu0
        %v1257 = vadd.f32 0.0, %v1256
        %1258 = vmatprep.mubr.f32.mxu0 0.0
        %1259 = vmatmul.mubr.f32.gmra.mrb[0].mxu0 %v1012
        %v1260 = vpop.f32.mrb[0].mxu0
        %v1261 = vadd.f32 0.0, %v1260
        %v1262 = vpop.f32.mrb[0].mxu0
        %v1263 = vadd.f32 0.0, %v1262
        %1264 = vmatprep.mubr.f32.mxu0 0.0
        %1265 = vmatmul.mubr.f32.gmra.mrb[0].mxu0 %v1015
        %v1266 = vpop.f32.mrb[0].mxu0
        %v1267 = vadd.f32 0.0, %v1266
        %v1268 = vpop.f32.mrb[0].mxu0
        %v1269 = vadd.f32 0.0, %v1268
        %1270 = vmatprep.mubr.f32.mxu0 0.0
        %1271 = vmatmul.mubr.f32.gmra.mrb[0].mxu0 %v1018
        %v1272 = vpop.f32.mrb[0].mxu0
        %v1273 = vadd.f32 0.0, %v1272
        %v1274 = vpop.f32.mrb[0].mxu0
        %v1275 = vadd.f32 0.0, %v1274
        %1276 = vdwg.mxu0
        %v1277 = vmul.f32 %v376, %v1087
        %v1278 = vmul.f32 %v378, %v1089
        %v1279 = vmul.f32 %v382, %v1093
        %v1280 = vmul.f32 %v384, %v1095
        %v1281 = vmul.f32 %v388, %v1099
        %v1282 = vmul.f32 %v390, %v1101
        %v1283 = vmul.f32 %v394, %v1105
        %v1284 = vmul.f32 %v396, %v1107
        %v1285 = vmul.f32 %v400, %v1111
        %v1286 = vmul.f32 %v402, %v1113
        %v1287 = vmul.f32 %v406, %v1117
        %v1288 = vmul.f32 %v408, %v1119
        %v1289 = vmul.f32 %v412, %v1123
        %v1290 = vmul.f32 %v414, %v1125
        %v1291 = vmul.f32 %v418, %v1129
        %v1292 = vmul.f32 %v420, %v1131
        %v1293 = vmul.f32 %v424, %v1135
        %v1294 = vmul.f32 %v426, %v1137
        %v1295 = vmul.f32 %v430, %v1141
        %v1296 = vmul.f32 %v432, %v1143
        %v1297 = vmul.f32 %v436, %v1147
        %v1298 = vmul.f32 %v438, %v1149
        %v1299 = vmul.f32 %v442, %v1153
        %v1300 = vmul.f32 %v444, %v1155
        %v1301 = vmul.f32 %v448, %v1159
        %v1302 = vmul.f32 %v450, %v1161
        %v1303 = vmul.f32 %v454, %v1165
        %v1304 = vmul.f32 %v456, %v1167
        %v1305 = vmul.f32 %v460, %v1171
        %v1306 = vmul.f32 %v462, %v1173
        %v1307 = vmul.f32 %v466, %v1177
        %v1308 = vmul.f32 %v468, %v1179
        %v1309 = vmul.f32 %v472, %v1183
        %v1310 = vmul.f32 %v474, %v1185
        %v1311 = vmul.f32 %v478, %v1189
        %v1312 = vmul.f32 %v480, %v1191
        %v1313 = vmul.f32 %v484, %v1195
        %v1314 = vmul.f32 %v486, %v1197
        %v1315 = vmul.f32 %v490, %v1201
        %v1316 = vmul.f32 %v492, %v1203
        %v1317 = vmul.f32 %v496, %v1207
        %v1318 = vmul.f32 %v498, %v1209
        %v1319 = vmul.f32 %v502, %v1213
        %v1320 = vmul.f32 %v504, %v1215
        %v1321 = vmul.f32 %v508, %v1219
        %v1322 = vmul.f32 %v510, %v1221
        %v1323 = vmul.f32 %v514, %v1225
        %v1324 = vmul.f32 %v516, %v1227
        %v1325 = vmul.f32 %v520, %v1231
        %v1326 = vmul.f32 %v522, %v1233
        %v1327 = vmul.f32 %v526, %v1237
        %v1328 = vmul.f32 %v528, %v1239
        %v1329 = vmul.f32 %v532, %v1243
        %v1330 = vmul.f32 %v534, %v1245
        %v1331 = vmul.f32 %v538, %v1249
        %v1332 = vmul.f32 %v540, %v1251
        %v1333 = vmul.f32 %v544, %v1255
        %v1334 = vmul.f32 %v546, %v1257
        %v1335 = vmul.f32 %v550, %v1261
        %v1336 = vmul.f32 %v552, %v1263
        %v1337 = vmul.f32 %v556, %v1267
        %v1338 = vmul.f32 %v558, %v1269
        %v1339 = vmul.f32 %v562, %v1273
        %v1340 = vmul.f32 %v564, %v1275
        %v1341 = vld [vmem:[%s4] sm:$0x3]
        %v1343 = vlaneseq
        %v1344 = vshrl.u32 %v1343, 7
        %v1345 = vsub.s32 0, %v1344
        %v1346 = vrot.slane %v1341, %v1345
        %v1347 = vlaneseq
        %v1348 = vshrl.u32 %v1347, 7
        %v1349 = vsub.s32 1, %v1348
        %v1350 = vrot.slane %v1341, %v1349
        %v1353 = vadd.f32 %v1277, %v1346
        %v1354 = vadd.f32 %v1278, %v1350
        %v1355 = vadd.f32 %v1279, %v1346
        %v1356 = vadd.f32 %v1280, %v1350
        %v1357 = vadd.f32 %v1281, %v1346
        %v1358 = vadd.f32 %v1282, %v1350
        %v1359 = vadd.f32 %v1283, %v1346
        %v1360 = vadd.f32 %v1284, %v1350
        %v1361 = vadd.f32 %v1285, %v1346
        %v1362 = vadd.f32 %v1286, %v1350
        %v1363 = vadd.f32 %v1287, %v1346
        %v1364 = vadd.f32 %v1288, %v1350
        %v1365 = vadd.f32 %v1289, %v1346
        %v1366 = vadd.f32 %v1290, %v1350
        %v1367 = vadd.f32 %v1291, %v1346
        %v1368 = vadd.f32 %v1292, %v1350
        %v1369 = vadd.f32 %v1293, %v1346
        %v1370 = vadd.f32 %v1294, %v1350
        %v1371 = vadd.f32 %v1295, %v1346
        %v1372 = vadd.f32 %v1296, %v1350
        %v1373 = vadd.f32 %v1297, %v1346
        %v1374 = vadd.f32 %v1298, %v1350
        %v1375 = vadd.f32 %v1299, %v1346
        %v1376 = vadd.f32 %v1300, %v1350
        %v1377 = vadd.f32 %v1301, %v1346
        %v1378 = vadd.f32 %v1302, %v1350
        %v1379 = vadd.f32 %v1303, %v1346
        %v1380 = vadd.f32 %v1304, %v1350
        %v1381 = vadd.f32 %v1305, %v1346
        %v1382 = vadd.f32 %v1306, %v1350
        %v1383 = vadd.f32 %v1307, %v1346
        %v1384 = vadd.f32 %v1308, %v1350
        %v1385 = vadd.f32 %v1309, %v1346
        %v1386 = vadd.f32 %v1310, %v1350
        %v1387 = vadd.f32 %v1311, %v1346
        %v1388 = vadd.f32 %v1312, %v1350
        %v1389 = vadd.f32 %v1313, %v1346
        %v1390 = vadd.f32 %v1314, %v1350
        %v1391 = vadd.f32 %v1315, %v1346
        %v1392 = vadd.f32 %v1316, %v1350
        %v1393 = vadd.f32 %v1317, %v1346
        %v1394 = vadd.f32 %v1318, %v1350
        %v1395 = vadd.f32 %v1319, %v1346
        %v1396 = vadd.f32 %v1320, %v1350
        %v1397 = vadd.f32 %v1321, %v1346
        %v1398 = vadd.f32 %v1322, %v1350
        %v1399 = vadd.f32 %v1323, %v1346
        %v1400 = vadd.f32 %v1324, %v1350
        %v1401 = vadd.f32 %v1325, %v1346
        %v1402 = vadd.f32 %v1326, %v1350
        %v1403 = vadd.f32 %v1327, %v1346
        %v1404 = vadd.f32 %v1328, %v1350
        %v1405 = vadd.f32 %v1329, %v1346
        %v1406 = vadd.f32 %v1330, %v1350
        %v1407 = vadd.f32 %v1331, %v1346
        %v1408 = vadd.f32 %v1332, %v1350
        %v1409 = vadd.f32 %v1333, %v1346
        %v1410 = vadd.f32 %v1334, %v1350
        %v1411 = vadd.f32 %v1335, %v1346
        %v1412 = vadd.f32 %v1336, %v1350
        %v1413 = vadd.f32 %v1337, %v1346
        %v1414 = vadd.f32 %v1338, %v1350
        %v1415 = vadd.f32 %v1339, %v1346
        %v1416 = vadd.f32 %v1340, %v1350
        %1417 = vst [vmem:[%s242] sm:$0xff] %v1353
        %1418 = vst [vmem:[%s242 + $0x10] sm:$0xff] %v1355
        %1419 = vst [vmem:[%s242 + $0x20] sm:$0xff] %v1357
        %1420 = vst [vmem:[%s242 + $0x30] sm:$0xff] %v1359
        %1421 = vst [vmem:[%s242 + $0x40] sm:$0xff] %v1361
        %1422 = vst [vmem:[%s242 + $0x50] sm:$0xff] %v1363
        %1423 = vst [vmem:[%s242 + $0x60] sm:$0xff] %v1365
        %1424 = vst [vmem:[%s242 + $0x70] sm:$0xff] %v1367
        %1425 = vst [vmem:[%s242 + $0x80] sm:$0xff] %v1369
        %1426 = vst [vmem:[%s242 + $0x90] sm:$0xff] %v1371
        %1427 = vst [vmem:[%s242 + $0xa0] sm:$0xff] %v1373
        %1428 = vst [vmem:[%s242 + $0xb0] sm:$0xff] %v1375
        %1429 = vst [vmem:[%s242 + $0xc0] sm:$0xff] %v1377
        %1430 = vst [vmem:[%s242 + $0xd0] sm:$0xff] %v1379
        %1431 = vst [vmem:[%s242 + $0xe0] sm:$0xff] %v1381
        %1432 = vst [vmem:[%s242 + $0xf0] sm:$0xff] %v1383
        %1433 = vst [vmem:[%s242 + $0x100] sm:$0xff] %v1385
        %1434 = vst [vmem:[%s242 + $0x110] sm:$0xff] %v1387
        %1435 = vst [vmem:[%s242 + $0x120] sm:$0xff] %v1389
        %1436 = vst [vmem:[%s242 + $0x130] sm:$0xff] %v1391
        %1437 = vst [vmem:[%s242 + $0x140] sm:$0xff] %v1393
        %1438 = vst [vmem:[%s242 + $0x150] sm:$0xff] %v1395
        %1439 = vst [vmem:[%s242 + $0x160] sm:$0xff] %v1397
        %1440 = vst [vmem:[%s242 + $0x170] sm:$0xff] %v1399
        %1441 = vst [vmem:[%s242 + $0x180] sm:$0xff] %v1401
        %1442 = vst [vmem:[%s242 + $0x190] sm:$0xff] %v1403
        %1443 = vst [vmem:[%s242 + $0x1a0] sm:$0xff] %v1405
        %1444 = vst [vmem:[%s242 + $0x1b0] sm:$0xff] %v1407
        %1445 = vst [vmem:[%s242 + $0x1c0] sm:$0xff] %v1409
        %1446 = vst [vmem:[%s242 + $0x1d0] sm:$0xff] %v1411
        %1447 = vst [vmem:[%s242 + $0x1e0] sm:$0xff] %v1413
        %1448 = vst [vmem:[%s242 + $0x1f0] sm:$0xff] %v1415
        %s1449 = scalar_lea.vmem %s242, 8 [#allocation5]
        %1450 = vst [vmem:[%s1449] sm:$0xff] %v1354
        %1451 = vst [vmem:[%s1449 + $0x10] sm:$0xff] %v1356
        %1452 = vst [vmem:[%s1449 + $0x20] sm:$0xff] %v1358
        %1453 = vst [vmem:[%s1449 + $0x30] sm:$0xff] %v1360
        %1454 = vst [vmem:[%s1449 + $0x40] sm:$0xff] %v1362
        %1455 = vst [vmem:[%s1449 + $0x50] sm:$0xff] %v1364
        %1456 = vst [vmem:[%s1449 + $0x60] sm:$0xff] %v1366
        %1457 = vst [vmem:[%s1449 + $0x70] sm:$0xff] %v1368
        %1458 = vst [vmem:[%s1449 + $0x80] sm:$0xff] %v1370
        %1459 = vst [vmem:[%s1449 + $0x90] sm:$0xff] %v1372
        %1460 = vst [vmem:[%s1449 + $0xa0] sm:$0xff] %v1374
        %1461 = vst [vmem:[%s1449 + $0xb0] sm:$0xff] %v1376
        %1462 = vst [vmem:[%s1449 + $0xc0] sm:$0xff] %v1378
        %1463 = vst [vmem:[%s1449 + $0xd0] sm:$0xff] %v1380
        %1464 = vst [vmem:[%s1449 + $0xe0] sm:$0xff] %v1382
        %1465 = vst [vmem:[%s1449 + $0xf0] sm:$0xff] %v1384
        %1466 = vst [vmem:[%s1449 + $0x100] sm:$0xff] %v1386
        %1467 = vst [vmem:[%s1449 + $0x110] sm:$0xff] %v1388
        %1468 = vst [vmem:[%s1449 + $0x120] sm:$0xff] %v1390
        %1469 = vst [vmem:[%s1449 + $0x130] sm:$0xff] %v1392
        %1470 = vst [vmem:[%s1449 + $0x140] sm:$0xff] %v1394
        %1471 = vst [vmem:[%s1449 + $0x150] sm:$0xff] %v1396
        %1472 = vst [vmem:[%s1449 + $0x160] sm:$0xff] %v1398
        %1473 = vst [vmem:[%s1449 + $0x170] sm:$0xff] %v1400
        %1474 = vst [vmem:[%s1449 + $0x180] sm:$0xff] %v1402
        %1475 = vst [vmem:[%s1449 + $0x190] sm:$0xff] %v1404
        %1476 = vst [vmem:[%s1449 + $0x1a0] sm:$0xff] %v1406
        %1477 = vst [vmem:[%s1449 + $0x1b0] sm:$0xff] %v1408
        %1478 = vst [vmem:[%s1449 + $0x1c0] sm:$0xff] %v1410
        %1479 = vst [vmem:[%s1449 + $0x1d0] sm:$0xff] %v1412
        %1480 = vst [vmem:[%s1449 + $0x1e0] sm:$0xff] %v1414
        %1481 = vst [vmem:[%s1449 + $0x1f0] sm:$0xff] %v1416
        %s1482 = sand.u32 %s140, 1
        %s1483 = scalar_lea.sflag [#allocation4], %s1482
        %s1484 = sand.u32 %s140, 1
        %s1485 = smul.addr %s1484, 512
        %s1486 = scalar_lea.vmem [#allocation5], %s1485
        // Predicated region
        $region45: #{tpu_custom_call.1} parent=39 // pred_check
          %p1487 = pneg %p150
        $region46: #{tpu_custom_call.1} parent=39 // pred_check_branch
          %1489 = sbr.rel (%p1487) target = $region48
        $region47: #{tpu_custom_call.1} parent=39 // pred_region
          %s1490 = smul.u32 32, %s22
          %s1492 = ssub.s32 8192, 8192
          %1493 = vsyncadd %s1483, %s1492
          %s1494 = smul.addr %s1490, 2
          %s1495 = smul.addr %s1494, 128
          %s1496 = scalar_lea.hbm %s5, %s1495
          %s1497 = sshll.u32 %s1486, 4
          %s1498 = int_to_ptr.vmem [resolvable:$true] %s1497
          %1503 = dma.vmem_to_hbm [thread:$0]  %s1498, 8192, %s1496, %s1483, 128, 128, 8
        $region48: #{tpu_custom_call.1} parent=39 // pred_fallthru
          _
      $region40: #{tpu_custom_call.1} parent=5 // pred_fallthru
        _
      %p1504 = scmp.le.s32.totalorder 2, %s17
      // Predicated region
      $region49: #{tpu_custom_call.1} parent=5 // pred_check
        %p1505 = pneg %p1504
      $region50: #{tpu_custom_call.1} parent=5 // pred_check_branch
        %1507 = sbr.rel (%p1505) target = $region52
      $region51: #{tpu_custom_call.1} parent=5 // pred_region
        %s1508 = ssub.s32 %s17, 2
        // Predicated region
        $region53: #{tpu_custom_call.1} parent=51 // pred_check
          %p1509 = pneg %p156
        $region54: #{tpu_custom_call.1} parent=51 // pred_check_branch
          %1511 = sbr.rel (%p1509) target = $region56
        $region55: #{tpu_custom_call.1} parent=51 // pred_region
          %s1512 = sand.u32 %s141, 1
          %s1513 = scalar_lea.sflag [#allocation4], %s1512
          %s1514 = sand.u32 %s141, 1
          %s1515 = smul.addr %s1514, 512
          %s1516 = scalar_lea.vmem [#allocation5], %s1515
          %1517 = dma.done %s1513, 8192
        $region56: #{tpu_custom_call.1} parent=51 // pred_fallthru
          _
      $region52: #{tpu_custom_call.1} parent=5 // pred_fallthru
        _
    $region6: #{tpu_custom_call.1} parent=1 // loop_footer
      %s21 = sadd.s32 1, %s17
    $region7: #{tpu_custom_call.1} parent=1 // loop_footer_branch
      %16 = sbr.rel target = $region3
    $region8: #{tpu_custom_call.1} parent=1 // loop_exit
      _
    %1518 = vsyncpa [#allocation3], 1
    %s1519 = scalar_lea.sflag [#allocation3], 1
    %1520 = vsyncpa %s1519, 1
    %1521 = vsyncpa [#allocation4], 1
    %s1522 = scalar_lea.sflag [#allocation4], 1
    %1523 = vsyncpa %s1522, 1

</llo_original>
